<compile_context>
chip_gen: v7x
topology: tpu7x:2x2x1
jax: 0.10.0
libtpu: 0.0.40
codegen_flags: <defaults>
</compile_context>

<pallas_src>
import functools
import math

import jax
import jax.numpy as jnp
from jax.experimental import pallas as pl
from jax.experimental.pallas import tpu as pltpu


def _round_up(x: int, m: int) -> int:
    return (x + m - 1) // m * m


def _device_kind() -> str:
    try:
        return jax.devices()[0].device_kind.lower()
    except Exception:
        return ""


_KIND = _device_kind()
# bf16 VALU exists on v6e / v7x; v5e (and older) keep the ReLU in f32.
_BF16_VPU = ("v6" in _KIND) or ("v7" in _KIND)
_HAS_BUFFERED = hasattr(pl, "Buffered")


def _vmem_capacity_bytes() -> int:
    try:
        return int(pltpu.get_tpu_info().vmem_capacity_bytes)
    except Exception:
        return 64 << 20  # conservative fallback (v7x per-TC VMEM)


# --------------------------------------------------------------------------- #
# Kernel
# --------------------------------------------------------------------------- #
def _make_mlp_kernel(num_layers: int, compute_dtype, relu_in_bf16: bool):
    """Fused kernel: refs = (x_tile, w0, b0, w1, b1, ..., out_tile)."""

    def kernel(*refs):
        x_ref = refs[0]
        out_ref = refs[-1]
        wb = refs[1:-1]

        # In-kernel cast (saves a full wrapper-side HBM round trip over x).
        h = x_ref[...].astype(compute_dtype)            # (TB, D0) bf16
        for li in range(num_layers):
            w_ref = wb[2 * li]
            b_ref = wb[2 * li + 1]
            # bf16 x bf16 -> f32 accumulate on the MXU.
            acc = jnp.dot(h, w_ref[...], preferred_element_type=jnp.float32)
            acc = acc + b_ref[...]                      # bias in f32, (1, N)
            if li < num_layers - 1:
                if relu_in_bf16:
                    # max(.,0) commutes with bf16 rounding -> identical result,
                    # half the VALU/vreg traffic on v6e/v7x.
                    h = jnp.maximum(acc.astype(compute_dtype),
                                    jnp.zeros((), compute_dtype))
                else:
                    h = jnp.maximum(acc, 0.0).astype(compute_dtype)
            else:
                # output_act = Identity; store lane-dense.
                out_ref[...] = acc.astype(out_ref.dtype)

    return kernel


# --------------------------------------------------------------------------- #
# Parameter helpers
# --------------------------------------------------------------------------- #
def init_mlp_params(key, input_dim, output_dim, num_nureons, dtype=jnp.float32):
    """Same layer shapes as the PyTorch module.  Returns [w0, b0, w1, b1, ...]
    with w_i of shape (in_d, out_d) (transposed vs torch) and b_i (1, out_d)."""
    in_dims = [input_dim] + list(num_nureons)
    out_dims = list(num_nureons) + [output_dim]
    params = []
    for in_d, out_d in zip(in_dims, out_dims):
        key, kw, kb = jax.random.split(key, 3)
        bound = 1.0 / math.sqrt(in_d)  # nn.Linear default init range
        w = jax.random.uniform(kw, (in_d, out_d), dtype, -bound, bound)
        b = jax.random.uniform(kb, (1, out_d), dtype, -bound, bound)
        params.extend([w, b])
    return params


def prepare_params(params, compute_dtype=jnp.bfloat16, pad_input_dim=False):
    """One-time prep: zero-pad every layer width up to a multiple of 128 lanes
    (results unchanged) and cast weights to the MXU compute dtype.  Biases stay
    f32 (added to the f32 accumulator).  The first-layer input width is only
    padded when it is large/misaligned (small in_dim uses the full-array-dim
    BlockSpec exception)."""
    num_layers = len(params) // 2
    prepared = []
    prev_out_pad = None
    for li in range(num_layers):
        w = params[2 * li]
        b = params[2 * li + 1]
        in_d, out_d = w.shape
        if li == 0:
            in_p = _round_up(in_d, 128) if (pad_input_dim or in_d > 128) else in_d
        else:
            in_p = prev_out_pad
        out_p = _round_up(out_d, 128)
        w_p = jnp.zeros((in_p, out_p), compute_dtype)
        w_p = w_p.at[:in_d, :out_d].set(w.astype(compute_dtype))
        b_p = jnp.zeros((1, out_p), jnp.float32)
        b_p = b_p.at[:, :out_d].set(b.astype(jnp.float32))
        prepared.extend([w_p, b_p])
        prev_out_pad = out_p
    return prepared


# --------------------------------------------------------------------------- #
# Forward
# --------------------------------------------------------------------------- #
@functools.partial(
    jax.jit,
    static_argnames=("output_dim", "batch_tile", "out_dtype", "single_buffer_params"),
)
def _mlp_forward_impl(x, prepared_params, *, output_dim, batch_tile, out_dtype,
                      single_buffer_params):
    num_layers = len(prepared_params) // 2
    batch, in_dim = x.shape
    compute_dtype = prepared_params[0].dtype
    in_p = prepared_params[0].shape[0]      # (possibly padded) input width
    out_p = prepared_params[-1].shape[-1]   # padded output width (mult of 128)

    # Pad x columns only if prepare_params padded the input width (rare).
    if in_p != in_dim:
        x = jnp.pad(x, ((0, 0), (0, in_p - in_dim)))

    # ---- batch tiling ------------------------------------------------------
    tb = min(int(batch_tile), _round_up(batch, 16))
    tb = _round_up(tb, 128) if tb >= 128 else max(16, _round_up(tb, 16))
    # Ensure >=2 grid steps when batch allows so the "parallel" axis actually
    # splits work across both TensorCores on v7x (free on v5e/v6e).
    if batch >= 32 and tb >= batch:
        tb = max(16, _round_up((batch + 1) // 2, 16))

    grid = (pl.cdiv(batch, tb),)   # uneven last tile: OOB reads are unused rows,
                                   # OOB writes are dropped by Pallas.

    # ---- BlockSpecs --------------------------------------------------------
    # x / out: tiled along batch (x stays f32 in HBM, cast in-kernel).
    # Weights/biases: constant index_map -> VMEM-resident; single-buffered
    # (they never change across grid steps), halving their VMEM footprint.
    param_spec_kwargs = {}
    if single_buffer_params:
        param_spec_kwargs = dict(pipeline_mode=pl.Buffered(1))

    in_specs = [pl.BlockSpec((tb, in_p), lambda i: (i, 0))]
    for li in range(num_layers):
        w = prepared_params[2 * li]
        b = prepared_params[2 * li + 1]
        in_specs.append(pl.BlockSpec(w.shape, lambda i: (0, 0), **param_spec_kwargs))
        in_specs.append(pl.BlockSpec(b.shape, lambda i: (0, 0), **param_spec_kwargs))
    out_specs = pl.BlockSpec((tb, out_p), lambda i: (i, 0))

    # ---- VMEM budget -------------------------------------------------------
    param_bufs = 1 if single_buffer_params else 2
    param_bytes = sum(math.prod(p.shape) * jnp.dtype(p.dtype).itemsize
                      for p in prepared_params)
    max_width = max(p.shape[-1] for p in prepared_params[0::2])
    io_bytes = (2 * tb * in_p * jnp.dtype(x.dtype).itemsize
                + 2 * tb * out_p * jnp.dtype(out_dtype).itemsize)
    # bf16 h of layer i and f32 acc of layer i+1 coexist.
    act_bytes = tb * max_width * (jnp.dtype(compute_dtype).itemsize + 4)
    vmem_bytes = int(1.5 * (param_bufs * param_bytes + io_bytes + act_bytes)) + (4 << 20)
    vmem_cap = int(0.75 * _vmem_capacity_bytes())
    vmem_bytes = max(16 << 20, min(vmem_bytes, vmem_cap))

    kernel = _make_mlp_kernel(num_layers, compute_dtype, _BF16_VPU)

    out_padded = pl.pallas_call(
        kernel,
        out_shape=jax.ShapeDtypeStruct((batch, out_p), out_dtype),
        grid=grid,
        in_specs=in_specs,
        out_specs=out_specs,
        compiler_params=pltpu.CompilerParams(
            dimension_semantics=("parallel",),   # batch tiles -> both TCs on v7x
            vmem_limit_bytes=vmem_bytes,
        ),
    )(x, *prepared_params)

    return out_padded[:, :output_dim]


def mlp_forward(x, prepared_params, *, output_dim, batch_tile=512,
                out_dtype=jnp.bfloat16):
    """Fused Pallas MLP forward.  `prepared_params` from prepare_params()."""
    prepared = tuple(prepared_params)
    if _HAS_BUFFERED:
        try:
            return _mlp_forward_impl(
                x, prepared, output_dim=output_dim, batch_tile=batch_tile,
                out_dtype=out_dtype, single_buffer_params=True)
        except Exception:
            # pipeline_mode=pl.Buffered(1) unsupported on this version/backend;
            # recompile with default double-buffering.
            pass
    return _mlp_forward_impl(
        x, prepared, output_dim=output_dim, batch_tile=batch_tile,
        out_dtype=out_dtype, single_buffer_params=False)


def mlp_reference(x, prepared_params, output_dim, out_dtype=jnp.bfloat16):
    """Pure-JAX reference with identical numerics (bf16 operands, f32 acc)."""
    num_layers = len(prepared_params) // 2
    compute_dtype = prepared_params[0].dtype
    in_p = prepared_params[0].shape[0]
    h = x
    if in_p != h.shape[1]:
        h = jnp.pad(h, ((0, 0), (0, in_p - h.shape[1])))
    h = h.astype(compute_dtype)
    out = None
    for li in range(num_layers):
        w = prepared_params[2 * li]
        b = prepared_params[2 * li + 1]
        acc = jnp.dot(h, w, preferred_element_type=jnp.float32) + b
        if li < num_layers - 1:
            h = jnp.maximum(acc, 0.0).astype(compute_dtype)
        else:
            out = acc.astype(out_dtype)
    return out[:, :output_dim]


def mlp_apply(x, prepared_params, *, output_dim, batch_tile=512,
              out_dtype=jnp.bfloat16, force_kernel=False):
    """Dispatcher: the Pallas kernel only pays off once the batch grid has a few
    steps and the params carry real DMA weight; tiny shapes use plain XLA."""
    batch = x.shape[0]
    max_width = max(p.shape[-1] for p in prepared_params[0::2])
    big_enough = batch >= 1024 and batch * max_width >= (1 << 20)
    if force_kernel or big_enough:
        return mlp_forward(x, prepared_params, output_dim=output_dim,
                           batch_tile=batch_tile, out_dtype=out_dtype)
    return mlp_reference(x, prepared_params, output_dim, out_dtype=out_dtype)


if __name__ == "__main__":
    # Small shapes consistent with the module:
    # mlp(input_dim=16, output_dim=8, num_nureons=[32, 32]) on a (50, 16) input.
    input_dim, output_dim = 16, 8
    num_nureons = [32, 32]
    batch = 50                      # not a tile multiple -> exercises uneven last tile

    key = jax.random.PRNGKey(0)
    key, kx = jax.random.split(key)
    x = jax.random.normal(kx, (batch, input_dim), jnp.float32)
    params = init_mlp_params(key, input_dim, output_dim, num_nureons)

    prepared = prepare_params(params, compute_dtype=jnp.bfloat16)

    # Call the Pallas kernel directly (mlp_apply would gate these tiny shapes
    # back to plain XLA).
    out = mlp_forward(x, prepared, output_dim=output_dim)
    out = jax.block_until_ready(out)

    ref = mlp_reference(x, prepared, output_dim)
    assert out.shape == (batch, output_dim), out.shape
    assert jnp.allclose(out.astype(jnp.float32), ref.astype(jnp.float32),
                        atol=2e-2, rtol=2e-2), "mismatch vs reference"

    print("KERNEL_OK")
</pallas_src>

<mosaic_0001>
module attributes {stable_mosaic.version = 11 : i64} {
  func.func @kernel(%arg0: i32, %arg1: memref<32x16xf32, #tpu.memory_space<vmem>>, %arg2: memref<16x128xbf16, #tpu.memory_space<vmem>>, %arg3: memref<1x128xf32, #tpu.memory_space<vmem>>, %arg4: memref<128x128xbf16, #tpu.memory_space<vmem>>, %arg5: memref<1x128xf32, #tpu.memory_space<vmem>>, %arg6: memref<128x128xbf16, #tpu.memory_space<vmem>>, %arg7: memref<1x128xf32, #tpu.memory_space<vmem>>, %arg8: memref<32x128xbf16, #tpu.memory_space<vmem>>) attributes {dimension_semantics = [#tpu.dimension_semantics<parallel>], iteration_bounds = array<i64: 2>, scalar_prefetch = 0 : i64, scratch_operands = 0 : i64, tpu.core_type = #tpu.core_type<tc>, window_params = [{transform_indices = @transform_0, window_bounds = array<i64: 32, 16>}, {pipeline_mode = #tpu.pipeline_mode<synchronous>, transform_indices = @transform_1, window_bounds = array<i64: 16, 128>}, {pipeline_mode = #tpu.pipeline_mode<synchronous>, transform_indices = @transform_2, window_bounds = array<i64: 1, 128>}, {pipeline_mode = #tpu.pipeline_mode<synchronous>, transform_indices = @transform_3, window_bounds = array<i64: 128, 128>}, {pipeline_mode = #tpu.pipeline_mode<synchronous>, transform_indices = @transform_4, window_bounds = array<i64: 1, 128>}, {pipeline_mode = #tpu.pipeline_mode<synchronous>, transform_indices = @transform_5, window_bounds = array<i64: 128, 128>}, {pipeline_mode = #tpu.pipeline_mode<synchronous>, transform_indices = @transform_6, window_bounds = array<i64: 1, 128>}, {transform_indices = @transform_7, window_bounds = array<i64: 32, 128>}]} {
    %c0 = arith.constant 0 : index
    %c0_0 = arith.constant 0 : index
    %0 = vector.load %arg1[%c0, %c0_0] : memref<32x16xf32, #tpu.memory_space<vmem>>, vector<32x16xf32>
    %1 = arith.truncf %0 : vector<32x16xf32> to vector<32x16xbf16>
    %c0_1 = arith.constant 0 : index
    %c0_2 = arith.constant 0 : index
    %2 = vector.load %arg2[%c0_1, %c0_2] : memref<16x128xbf16, #tpu.memory_space<vmem>>, vector<16x128xbf16>
    %cst = arith.constant dense<0.000000e+00> : vector<32x128xf32>
    %3 = tpu.matmul %1, %2, %cst {dimension_numbers = #tpu.dot_dimension_numbers<[1], [0], [0], [1], [0, 0, 1, 1], [], []>} : vector<32x16xbf16>, vector<16x128xbf16>, vector<32x128xf32> -> vector<32x128xf32>
    %c0_3 = arith.constant 0 : index
    %c0_4 = arith.constant 0 : index
    %4 = vector.load %arg3[%c0_3, %c0_4] : memref<1x128xf32, #tpu.memory_space<vmem>>, vector<1x128xf32>
    %5 = vector.broadcast %4 : vector<1x128xf32> to vector<32x128xf32>
    %6 = arith.addf %3, %5 : vector<32x128xf32>
    %cst_5 = arith.constant 0.000000e+00 : f32
    %7 = vector.broadcast %cst_5 : f32 to vector<32x128xf32>
    %8 = arith.maximumf %6, %7 : vector<32x128xf32>
    %9 = arith.truncf %8 : vector<32x128xf32> to vector<32x128xbf16>
    %c0_6 = arith.constant 0 : index
    %c0_7 = arith.constant 0 : index
    %10 = vector.load %arg4[%c0_6, %c0_7] : memref<128x128xbf16, #tpu.memory_space<vmem>>, vector<128x128xbf16>
    %cst_8 = arith.constant dense<0.000000e+00> : vector<32x128xf32>
    %11 = tpu.matmul %9, %10, %cst_8 {dimension_numbers = #tpu.dot_dimension_numbers<[1], [0], [0], [1], [0, 0, 1, 1], [], []>} : vector<32x128xbf16>, vector<128x128xbf16>, vector<32x128xf32> -> vector<32x128xf32>
    %c0_9 = arith.constant 0 : index
    %c0_10 = arith.constant 0 : index
    %12 = vector.load %arg5[%c0_9, %c0_10] : memref<1x128xf32, #tpu.memory_space<vmem>>, vector<1x128xf32>
    %13 = vector.broadcast %12 : vector<1x128xf32> to vector<32x128xf32>
    %14 = arith.addf %11, %13 : vector<32x128xf32>
    %cst_11 = arith.constant 0.000000e+00 : f32
    %15 = vector.broadcast %cst_11 : f32 to vector<32x128xf32>
    %16 = arith.maximumf %14, %15 : vector<32x128xf32>
    %17 = arith.truncf %16 : vector<32x128xf32> to vector<32x128xbf16>
    %c0_12 = arith.constant 0 : index
    %c0_13 = arith.constant 0 : index
    %18 = vector.load %arg6[%c0_12, %c0_13] : memref<128x128xbf16, #tpu.memory_space<vmem>>, vector<128x128xbf16>
    %cst_14 = arith.constant dense<0.000000e+00> : vector<32x128xf32>
    %19 = tpu.matmul %17, %18, %cst_14 {dimension_numbers = #tpu.dot_dimension_numbers<[1], [0], [0], [1], [0, 0, 1, 1], [], []>} : vector<32x128xbf16>, vector<128x128xbf16>, vector<32x128xf32> -> vector<32x128xf32>
    %c0_15 = arith.constant 0 : index
    %c0_16 = arith.constant 0 : index
    %20 = vector.load %arg7[%c0_15, %c0_16] : memref<1x128xf32, #tpu.memory_space<vmem>>, vector<1x128xf32>
    %21 = vector.broadcast %20 : vector<1x128xf32> to vector<32x128xf32>
    %22 = arith.addf %19, %21 : vector<32x128xf32>
    %23 = arith.truncf %22 : vector<32x128xf32> to vector<32x128xbf16>
    %c0_17 = arith.constant 0 : index
    %c0_18 = arith.constant 0 : index
    %24 = vector.load %arg8[%c0_17, %c0_18] : memref<32x128xbf16, #tpu.memory_space<vmem>>, vector<32x128xbf16>
    tpu.vector_store %arg8[%c0_17, %c0_18], %23 {strides = array<i32>} : memref<32x128xbf16, #tpu.memory_space<vmem>>, vector<32x128xbf16>,
    return
  }
  func.func @transform_0(%arg0: i32) -> (i32, i32) {
    %c0_i32 = arith.constant 0 : i32
    %c0_i32_0 = arith.constant 0 : i32
    return %arg0, %c0_i32 : i32, i32
  }
  func.func @transform_1(%arg0: i32) -> (i32, i32) {
    %c0_i32 = arith.constant 0 : i32
    %c0_i32_0 = arith.constant 0 : i32
    %c0_i32_1 = arith.constant 0 : i32
    return %c0_i32, %c0_i32_0 : i32, i32
  }
  func.func @transform_2(%arg0: i32) -> (i32, i32) {
    %c0_i32 = arith.constant 0 : i32
    %c0_i32_0 = arith.constant 0 : i32
    %c0_i32_1 = arith.constant 0 : i32
    return %c0_i32, %c0_i32_0 : i32, i32
  }
  func.func @transform_3(%arg0: i32) -> (i32, i32) {
    %c0_i32 = arith.constant 0 : i32
    %c0_i32_0 = arith.constant 0 : i32
    %c0_i32_1 = arith.constant 0 : i32
    return %c0_i32, %c0_i32_0 : i32, i32
  }
  func.func @transform_4(%arg0: i32) -> (i32, i32) {
    %c0_i32 = arith.constant 0 : i32
    %c0_i32_0 = arith.constant 0 : i32
    %c0_i32_1 = arith.constant 0 : i32
    return %c0_i32, %c0_i32_0 : i32, i32
  }
  func.func @transform_5(%arg0: i32) -> (i32, i32) {
    %c0_i32 = arith.constant 0 : i32
    %c0_i32_0 = arith.constant 0 : i32
    %c0_i32_1 = arith.constant 0 : i32
    return %c0_i32, %c0_i32_0 : i32, i32
  }
  func.func @transform_6(%arg0: i32) -> (i32, i32) {
    %c0_i32 = arith.constant 0 : i32
    %c0_i32_0 = arith.constant 0 : i32
    %c0_i32_1 = arith.constant 0 : i32
    return %c0_i32, %c0_i32_0 : i32, i32
  }
  func.func @transform_7(%arg0: i32) -> (i32, i32) {
    %c0_i32 = arith.constant 0 : i32
    %c0_i32_0 = arith.constant 0 : i32
    return %arg0, %c0_i32 : i32, i32
  }
}

module attributes {stable_mosaic.version = 11 : i64} {
  func.func @kernel(%arg0: i32, %arg1: memref<32x16xf32, #tpu.memory_space<vmem>>, %arg2: memref<16x128xbf16, #tpu.memory_space<vmem>>, %arg3: memref<1x128xf32, #tpu.memory_space<vmem>>, %arg4: memref<128x128xbf16, #tpu.memory_space<vmem>>, %arg5: memref<1x128xf32, #tpu.memory_space<vmem>>, %arg6: memref<128x128xbf16, #tpu.memory_space<vmem>>, %arg7: memref<1x128xf32, #tpu.memory_space<vmem>>, %arg8: memref<32x128xbf16, #tpu.memory_space<vmem>>) attributes {dimension_semantics = [#tpu.dimension_semantics<parallel>], iteration_bounds = array<i64: 2>, scalar_prefetch = 0 : i64, scratch_operands = 0 : i64, tpu.core_type = #tpu.core_type<tc>, window_params = [{transform_indices = @transform_0, window_bounds = array<i64: 32, 16>}, {pipeline_mode = #tpu.pipeline_mode<synchronous>, transform_indices = @transform_1, window_bounds = array<i64: 16, 128>}, {pipeline_mode = #tpu.pipeline_mode<synchronous>, transform_indices = @transform_2, window_bounds = array<i64: 1, 128>}, {pipeline_mode = #tpu.pipeline_mode<synchronous>, transform_indices = @transform_3, window_bounds = array<i64: 128, 128>}, {pipeline_mode = #tpu.pipeline_mode<synchronous>, transform_indices = @transform_4, window_bounds = array<i64: 1, 128>}, {pipeline_mode = #tpu.pipeline_mode<synchronous>, transform_indices = @transform_5, window_bounds = array<i64: 128, 128>}, {pipeline_mode = #tpu.pipeline_mode<synchronous>, transform_indices = @transform_6, window_bounds = array<i64: 1, 128>}, {transform_indices = @transform_7, window_bounds = array<i64: 32, 128>}]} {
    %c0 = arith.constant 0 : index
    %c0_0 = arith.constant 0 : index
    %0 = vector.load %arg1[%c0, %c0_0] : memref<32x16xf32, #tpu.memory_space<vmem>>, vector<32x16xf32>
    %1 = arith.truncf %0 : vector<32x16xf32> to vector<32x16xbf16>
    %c0_1 = arith.constant 0 : index
    %c0_2 = arith.constant 0 : index
    %2 = vector.load %arg2[%c0_1, %c0_2] : memref<16x128xbf16, #tpu.memory_space<vmem>>, vector<16x128xbf16>
    %cst = arith.constant dense<0.000000e+00> : vector<32x128xf32>
    %3 = tpu.matmul %1, %2, %cst {dimension_numbers = #tpu.dot_dimension_numbers<[1], [0], [0], [1], [0, 0, 1, 1], [], []>} : vector<32x16xbf16>, vector<16x128xbf16>, vector<32x128xf32> -> vector<32x128xf32>
    %c0_3 = arith.constant 0 : index
    %c0_4 = arith.constant 0 : index
    %4 = vector.load %arg3[%c0_3, %c0_4] : memref<1x128xf32, #tpu.memory_space<vmem>>, vector<1x128xf32>
    %5 = vector.broadcast %4 : vector<1x128xf32> to vector<32x128xf32>
    %6 = arith.addf %3, %5 : vector<32x128xf32>
    %cst_5 = arith.constant 0.000000e+00 : f32
    %7 = vector.broadcast %cst_5 : f32 to vector<32x128xf32>
    %8 = arith.maximumf %6, %7 : vector<32x128xf32>
    %9 = arith.truncf %8 : vector<32x128xf32> to vector<32x128xbf16>
    %c0_6 = arith.constant 0 : index
    %c0_7 = arith.constant 0 : index
    %10 = vector.load %arg4[%c0_6, %c0_7] : memref<128x128xbf16, #tpu.memory_space<vmem>>, vector<128x128xbf16>
    %cst_8 = arith.constant dense<0.000000e+00> : vector<32x128xf32>
    %11 = tpu.matmul %9, %10, %cst_8 {dimension_numbers = #tpu.dot_dimension_numbers<[1], [0], [0], [1], [0, 0, 1, 1], [], []>} : vector<32x128xbf16>, vector<128x128xbf16>, vector<32x128xf32> -> vector<32x128xf32>
    %c0_9 = arith.constant 0 : index
    %c0_10 = arith.constant 0 : index
    %12 = vector.load %arg5[%c0_9, %c0_10] : memref<1x128xf32, #tpu.memory_space<vmem>>, vector<1x128xf32>
    %13 = vector.broadcast %12 : vector<1x128xf32> to vector<32x128xf32>
    %14 = arith.addf %11, %13 : vector<32x128xf32>
    %cst_11 = arith.constant 0.000000e+00 : f32
    %15 = vector.broadcast %cst_11 : f32 to vector<32x128xf32>
    %16 = arith.maximumf %14, %15 : vector<32x128xf32>
    %17 = arith.truncf %16 : vector<32x128xf32> to vector<32x128xbf16>
    %c0_12 = arith.constant 0 : index
    %c0_13 = arith.constant 0 : index
    %18 = vector.load %arg6[%c0_12, %c0_13] : memref<128x128xbf16, #tpu.memory_space<vmem>>, vector<128x128xbf16>
    %cst_14 = arith.constant dense<0.000000e+00> : vector<32x128xf32>
    %19 = tpu.matmul %17, %18, %cst_14 {dimension_numbers = #tpu.dot_dimension_numbers<[1], [0], [0], [1], [0, 0, 1, 1], [], []>} : vector<32x128xbf16>, vector<128x128xbf16>, vector<32x128xf32> -> vector<32x128xf32>
    %c0_15 = arith.constant 0 : index
    %c0_16 = arith.constant 0 : index
    %20 = vector.load %arg7[%c0_15, %c0_16] : memref<1x128xf32, #tpu.memory_space<vmem>>, vector<1x128xf32>
    %21 = vector.broadcast %20 : vector<1x128xf32> to vector<32x128xf32>
    %22 = arith.addf %19, %21 : vector<32x128xf32>
    %23 = arith.truncf %22 : vector<32x128xf32> to vector<32x128xbf16>
    %c0_17 = arith.constant 0 : index
    %c0_18 = arith.constant 0 : index
    %24 = vector.load %arg8[%c0_17, %c0_18] : memref<32x128xbf16, #tpu.memory_space<vmem>>, vector<32x128xbf16>
    tpu.vector_store %arg8[%c0_17, %c0_18], %23 {strides = array<i32>} : memref<32x128xbf16, #tpu.memory_space<vmem>>, vector<32x128xbf16>,
    return
  }
  func.func @transform_0(%arg0: i32) -> (i32, i32) {
    %c0_i32 = arith.constant 0 : i32
    %c0_i32_0 = arith.constant 0 : i32
    return %arg0, %c0_i32 : i32, i32
  }
  func.func @transform_1(%arg0: i32) -> (i32, i32) {
    %c0_i32 = arith.constant 0 : i32
    %c0_i32_0 = arith.constant 0 : i32
    %c0_i32_1 = arith.constant 0 : i32
    return %c0_i32, %c0_i32_0 : i32, i32
  }
  func.func @transform_2(%arg0: i32) -> (i32, i32) {
    %c0_i32 = arith.constant 0 : i32
    %c0_i32_0 = arith.constant 0 : i32
    %c0_i32_1 = arith.constant 0 : i32
    return %c0_i32, %c0_i32_0 : i32, i32
  }
  func.func @transform_3(%arg0: i32) -> (i32, i32) {
    %c0_i32 = arith.constant 0 : i32
    %c0_i32_0 = arith.constant 0 : i32
    %c0_i32_1 = arith.constant 0 : i32
    return %c0_i32, %c0_i32_0 : i32, i32
  }
  func.func @transform_4(%arg0: i32) -> (i32, i32) {
    %c0_i32 = arith.constant 0 : i32
    %c0_i32_0 = arith.constant 0 : i32
    %c0_i32_1 = arith.constant 0 : i32
    return %c0_i32, %c0_i32_0 : i32, i32
  }
  func.func @transform_5(%arg0: i32) -> (i32, i32) {
    %c0_i32 = arith.constant 0 : i32
    %c0_i32_0 = arith.constant 0 : i32
    %c0_i32_1 = arith.constant 0 : i32
    return %c0_i32, %c0_i32_0 : i32, i32
  }
  func.func @transform_6(%arg0: i32) -> (i32, i32) {
    %c0_i32 = arith.constant 0 : i32
    %c0_i32_0 = arith.constant 0 : i32
    %c0_i32_1 = arith.constant 0 : i32
    return %c0_i32, %c0_i32_0 : i32, i32
  }
  func.func @transform_7(%arg0: i32) -> (i32, i32) {
    %c0_i32 = arith.constant 0 : i32
    %c0_i32_0 = arith.constant 0 : i32
    return %arg0, %c0_i32 : i32, i32
  }
}

</mosaic_0001>

<llo_original>
// kernel: _mlp_forward_impl.1
$region0: #{_mlp_forward_impl.1}
  #allocation0 [shape = 'u32[]', space=smem, size = 0x4, offset = 0x4, fixed_abs, tag = 'smem constant byte address 0x4 - core index']
  #allocation1 [shape = 'u32[144,128]{1,0:T(1,128)}', space=vmem, size = 0x12000, scoped, tag = 'internal scratch']
  %s0 = inlined_call_operand.vmem [shape: f32[50,16], index: 0, kind: input, shape index: {}]
  %s1 = inlined_call_operand.vmem [shape: bf16[16,128], index: 1, kind: input, shape index: {}]
  %s2 = inlined_call_operand.vmem [shape: f32[1,128], index: 2, kind: input, shape index: {}]
  %s3 = inlined_call_operand.vmem [shape: bf16[128,128], index: 3, kind: input, shape index: {}]
  %s4 = inlined_call_operand.vmem [shape: f32[1,128], index: 4, kind: input, shape index: {}]
  %s5 = inlined_call_operand.hbm [shape: bf16[128,128], index: 5, kind: input, shape index: {}]
  %s6 = inlined_call_operand.vmem [shape: f32[1,128], index: 6, kind: input, shape index: {}]
  %s7 = inlined_call_operand.vmem [shape: bf16[50,128], index: 7, kind: output, shape index: {}]
  %s8 = sld [smem:[#allocation0]]
  $region109: #{_mlp_forward_impl.1} parent=0
    _
  %s10 = ssub.s32 1, %s8
  %s11 = scalar_select 0, %s10, %s8
  $region1: #{_mlp_forward_impl.1} parent=0
    #allocation2 [shape = 'u8[32768]{0}', space=vmem, size = 0x8000, scoped, tag = 'input window, operand 5, single buffered']
    #allocation3 [shape = 's32[2]{0}', space=sflag, size = 0x8, scoped, tag = 'scoped memory for _mlp_forward_impl.1']
    #allocation4 [shape = 'u8[16384]{0}', space=vmem, size = 0x4000, scoped, tag = 'output window, operand 0']
    %12 = vsyncpa [#allocation3], 0
    loop: start=0, step=1, limit=4
    $region2: #{_mlp_forward_impl.1} parent=1 // loop_pre_header
      _
    $region3: #{_mlp_forward_impl.1} parent=1 // loop_header
      %s14 = sphi 0, %s18
      %p15 = scmp.ge.s32.totalorder %s14, 4
      %s24 = sphi 0, %s26
      %s27 = sphi 0, %s24
      %s28 = sphi 0, %s27
      %s44 = sphi 0, %s28
      %s48 = sphi 0, %s48
      %s50 = sphi 0, %s48
      %s51 = sphi 0, %s50
      %s65 = sphi 0, %s51
      %s69 = sphi 0, %s69
      %s71 = sphi 0, %s69
      %s72 = sphi 0, %s71
      %s86 = sphi 0, %s72
      %s90 = sphi 0, %s90
      %s92 = sphi 0, %s90
      %s93 = sphi 0, %s92
      %s107 = sphi 0, %s93
      %s111 = sphi 0, %s111
      %s113 = sphi 0, %s111
      %s114 = sphi 0, %s113
      %s128 = sphi 0, %s114
      %s132 = sphi 0, %s132
      %s134 = sphi 0, %s132
      %s135 = sphi 0, %s134
      %s149 = sphi 0, %s135
      %s153 = sphi 0, %s153
      %s155 = sphi 0, %s153
      %s156 = sphi 0, %s155
      %s170 = sphi 0, %s156
      %s176 = sphi 0, %s178
      %s179 = sphi 0, %s176
      %s180 = sphi 0, %s179
      %s196 = sphi 0, %s180
    $region4: #{_mlp_forward_impl.1} parent=1 // loop_header_branch
      %17 = sbr.rel (%p15) target = $region8
    $region5: #{_mlp_forward_impl.1} parent=1 // loop_body
      %s19 = ssub.s32 %s14, 1
      %s20 = ssub.s32 %s14, 2
      %s21 = sadd.s32 %s14, 1
      %s22 = ssub.s32 %s14, %s21
      %p23 = scmp.eq.s32.totalorder %s22, 0
      %s25 = sadd.s32 %s24, 1
      %s26 = scalar_select %p23, %s24, %s25
      %p29 = pneg %p23
      %p30 = scmp.eq.s32.totalorder %s14, 1
      %p31 = por %p29, %p30
      %p32 = scmp.ne.s32.totalorder %s24, %s27
      %p33 = scmp.eq.s32.totalorder %s14, 0
      %p34 = por %p32, %p33
      %p35 = scmp.ne.s32.totalorder %s24, %s27
      %p36 = scmp.eq.s32.totalorder %s19, 1
      %p37 = por %p35, %p36
      %p38 = scmp.ne.s32.totalorder %s27, %s28
      %p39 = scmp.eq.s32.totalorder %s19, 0
      %p40 = por %p38, %p39
      %p41 = scmp.ne.s32.totalorder %s27, %s28
      %p42 = scmp.eq.s32.totalorder %s20, 1
      %p43 = por %p41, %p42
      %p45 = scmp.ne.s32.totalorder %s28, %s44
      %p46 = scmp.eq.s32.totalorder %s20, 0
      %p47 = por %p45, %p46
      %s49 = sadd.s32 %s48, 1
      %p52 = scmp.eq.s32.totalorder %s14, 1
      %p53 = scmp.ne.s32.totalorder %s48, %s50
      %p54 = scmp.eq.s32.totalorder %s14, 0
      %p55 = por %p53, %p54
      %p56 = scmp.ne.s32.totalorder %s48, %s50
      %p57 = scmp.eq.s32.totalorder %s19, 1
      %p58 = por %p56, %p57
      %p59 = scmp.ne.s32.totalorder %s50, %s51
      %p60 = scmp.eq.s32.totalorder %s19, 0
      %p61 = por %p59, %p60
      %p62 = scmp.ne.s32.totalorder %s50, %s51
      %p63 = scmp.eq.s32.totalorder %s20, 1
      %p64 = por %p62, %p63
      %p66 = scmp.ne.s32.totalorder %s51, %s65
      %p67 = scmp.eq.s32.totalorder %s20, 0
      %p68 = por %p66, %p67
      %s70 = sadd.s32 %s69, 1
      %p73 = scmp.eq.s32.totalorder %s14, 1
      %p74 = scmp.ne.s32.totalorder %s69, %s71
      %p75 = scmp.eq.s32.totalorder %s14, 0
      %p76 = por %p74, %p75
      %p77 = scmp.ne.s32.totalorder %s69, %s71
      %p78 = scmp.eq.s32.totalorder %s19, 1
      %p79 = por %p77, %p78
      %p80 = scmp.ne.s32.totalorder %s71, %s72
      %p81 = scmp.eq.s32.totalorder %s19, 0
      %p82 = por %p80, %p81
      %p83 = scmp.ne.s32.totalorder %s71, %s72
      %p84 = scmp.eq.s32.totalorder %s20, 1
      %p85 = por %p83, %p84
      %p87 = scmp.ne.s32.totalorder %s72, %s86
      %p88 = scmp.eq.s32.totalorder %s20, 0
      %p89 = por %p87, %p88
      %s91 = sadd.s32 %s90, 1
      %p94 = scmp.eq.s32.totalorder %s14, 1
      %p95 = scmp.ne.s32.totalorder %s90, %s92
      %p96 = scmp.eq.s32.totalorder %s14, 0
      %p97 = por %p95, %p96
      %p98 = scmp.ne.s32.totalorder %s90, %s92
      %p99 = scmp.eq.s32.totalorder %s19, 1
      %p100 = por %p98, %p99
      %p101 = scmp.ne.s32.totalorder %s92, %s93
      %p102 = scmp.eq.s32.totalorder %s19, 0
      %p103 = por %p101, %p102
      %p104 = scmp.ne.s32.totalorder %s92, %s93
      %p105 = scmp.eq.s32.totalorder %s20, 1
      %p106 = por %p104, %p105
      %p108 = scmp.ne.s32.totalorder %s93, %s107
      %p109 = scmp.eq.s32.totalorder %s20, 0
      %p110 = por %p108, %p109
      %s112 = sadd.s32 %s111, 1
      %p115 = scmp.eq.s32.totalorder %s14, 1
      %p116 = scmp.ne.s32.totalorder %s111, %s113
      %p117 = scmp.eq.s32.totalorder %s14, 0
      %p118 = por %p116, %p117
      %p119 = scmp.ne.s32.totalorder %s111, %s113
      %p120 = scmp.eq.s32.totalorder %s19, 1
      %p121 = por %p119, %p120
      %p122 = scmp.ne.s32.totalorder %s113, %s114
      %p123 = scmp.eq.s32.totalorder %s19, 0
      %p124 = por %p122, %p123
      %p125 = scmp.ne.s32.totalorder %s113, %s114
      %p126 = scmp.eq.s32.totalorder %s20, 1
      %p127 = por %p125, %p126
      %p129 = scmp.ne.s32.totalorder %s114, %s128
      %p130 = scmp.eq.s32.totalorder %s20, 0
      %p131 = por %p129, %p130
      %s133 = sadd.s32 %s132, 1
      %p136 = scmp.eq.s32.totalorder %s14, 1
      %p137 = scmp.ne.s32.totalorder %s132, %s134
      %p138 = scmp.eq.s32.totalorder %s14, 0
      %p139 = por %p137, %p138
      %p140 = scmp.ne.s32.totalorder %s132, %s134
      %p141 = scmp.eq.s32.totalorder %s19, 1
      %p142 = por %p140, %p141
      %p143 = scmp.ne.s32.totalorder %s134, %s135
      %p144 = scmp.eq.s32.totalorder %s19, 0
      %p145 = por %p143, %p144
      %p146 = scmp.ne.s32.totalorder %s134, %s135
      %p147 = scmp.eq.s32.totalorder %s20, 1
      %p148 = por %p146, %p147
      %p150 = scmp.ne.s32.totalorder %s135, %s149
      %p151 = scmp.eq.s32.totalorder %s20, 0
      %p152 = por %p150, %p151
      %s154 = sadd.s32 %s153, 1
      %p157 = scmp.eq.s32.totalorder %s14, 1
      %p158 = scmp.ne.s32.totalorder %s153, %s155
      %p159 = scmp.eq.s32.totalorder %s14, 0
      %p160 = por %p158, %p159
      %p161 = scmp.ne.s32.totalorder %s153, %s155
      %p162 = scmp.eq.s32.totalorder %s19, 1
      %p163 = por %p161, %p162
      %p164 = scmp.ne.s32.totalorder %s155, %s156
      %p165 = scmp.eq.s32.totalorder %s19, 0
      %p166 = por %p164, %p165
      %p167 = scmp.ne.s32.totalorder %s155, %s156
      %p168 = scmp.eq.s32.totalorder %s20, 1
      %p169 = por %p167, %p168
      %p171 = scmp.ne.s32.totalorder %s156, %s170
      %p172 = scmp.eq.s32.totalorder %s20, 0
      %p173 = por %p171, %p172
      %s174 = ssub.s32 %s14, %s21
      %p175 = scmp.eq.s32.totalorder %s174, 0
      %s177 = sadd.s32 %s176, 1
      %s178 = scalar_select %p175, %s176, %s177
      %p181 = pneg %p175
      %p182 = scmp.eq.s32.totalorder %s14, 1
      %p183 = por %p181, %p182
      %p184 = scmp.ne.s32.totalorder %s176, %s179
      %p185 = scmp.eq.s32.totalorder %s14, 0
      %p186 = por %p184, %p185
      %p187 = scmp.ne.s32.totalorder %s176, %s179
      %p188 = scmp.eq.s32.totalorder %s19, 1
      %p189 = por %p187, %p188
      %p190 = scmp.ne.s32.totalorder %s179, %s180
      %p191 = scmp.eq.s32.totalorder %s19, 0
      %p192 = por %p190, %p191
      %p193 = scmp.ne.s32.totalorder %s179, %s180
      %p194 = scmp.eq.s32.totalorder %s20, 1
      %p195 = por %p193, %p194
      %p197 = scmp.ne.s32.totalorder %s180, %s196
      %p198 = scmp.eq.s32.totalorder %s20, 0
      %p199 = por %p197, %p198
      %p200 = scmp.le.s32.totalorder 1, %s14
      %p201 = scmp.lt.s32.totalorder %s14, 3
      %p202 = pnand %p200, %p201
      %p203 = pneg %p202
      // Predicated region
      $region9: #{_mlp_forward_impl.1} parent=5 // pred_check
        _
      $region10: #{_mlp_forward_impl.1} parent=5 // pred_check_branch
        %205 = sbr.rel (%p202) target = $region12
      $region11: #{_mlp_forward_impl.1} parent=5 // pred_region
        %s206 = ssub.s32 %s14, 1
        // Predicated region
        $region13: #{_mlp_forward_impl.1} parent=11 // pred_check
          %p207 = pneg %p61
        $region14: #{_mlp_forward_impl.1} parent=11 // pred_check_branch
          %209 = sbr.rel (%p207) target = $region16
        $region15: #{_mlp_forward_impl.1} parent=11 // pred_region
          _
        $region16: #{_mlp_forward_impl.1} parent=11 // pred_fallthru
          _
        // Predicated region
        $region17: #{_mlp_forward_impl.1} parent=11 // pred_check
          %p210 = pneg %p82
        $region18: #{_mlp_forward_impl.1} parent=11 // pred_check_branch
          %212 = sbr.rel (%p210) target = $region20
        $region19: #{_mlp_forward_impl.1} parent=11 // pred_region
          _
        $region20: #{_mlp_forward_impl.1} parent=11 // pred_fallthru
          _
        // Predicated region
        $region21: #{_mlp_forward_impl.1} parent=11 // pred_check
          %p213 = pneg %p103
        $region22: #{_mlp_forward_impl.1} parent=11 // pred_check_branch
          %215 = sbr.rel (%p213) target = $region24
        $region23: #{_mlp_forward_impl.1} parent=11 // pred_region
          _
        $region24: #{_mlp_forward_impl.1} parent=11 // pred_fallthru
          _
        // Predicated region
        $region25: #{_mlp_forward_impl.1} parent=11 // pred_check
          %p216 = pneg %p124
        $region26: #{_mlp_forward_impl.1} parent=11 // pred_check_branch
          %218 = sbr.rel (%p216) target = $region28
        $region27: #{_mlp_forward_impl.1} parent=11 // pred_region
          _
        $region28: #{_mlp_forward_impl.1} parent=11 // pred_fallthru
          _
        // Predicated region
        $region29: #{_mlp_forward_impl.1} parent=11 // pred_check
          %p219 = pneg %p145
        $region30: #{_mlp_forward_impl.1} parent=11 // pred_check_branch
          %221 = sbr.rel (%p219) target = $region32
        $region31: #{_mlp_forward_impl.1} parent=11 // pred_region
          %s223 = ssub.s32 1024, 1024
          %224 = vsyncadd [#allocation3], %s223
          %s225 = sshll.u32 [#allocation2], 4
          %s226 = int_to_ptr.vmem [resolvable:$true] %s225
          %231 = dma.hbm_to_vmem [thread:$0]  %s5, 1024, %s226, [#allocation3], 64, 64, 4
        $region32: #{_mlp_forward_impl.1} parent=11 // pred_fallthru
          _
        // Predicated region
        $region33: #{_mlp_forward_impl.1} parent=11 // pred_check
          %p232 = pneg %p166
        $region34: #{_mlp_forward_impl.1} parent=11 // pred_check_branch
          %234 = sbr.rel (%p232) target = $region36
        $region35: #{_mlp_forward_impl.1} parent=11 // pred_region
          _
        $region36: #{_mlp_forward_impl.1} parent=11 // pred_fallthru
          _
      $region12: #{_mlp_forward_impl.1} parent=5 // pred_fallthru
        _
      %p235 = scmp.lt.s32.totalorder %s14, 2
      // Predicated region
      $region37: #{_mlp_forward_impl.1} parent=5 // pred_check
        %p236 = pneg %p235
      $region38: #{_mlp_forward_impl.1} parent=5 // pred_check_branch
        %238 = sbr.rel (%p236) target = $region40
      $region39: #{_mlp_forward_impl.1} parent=5 // pred_region
        // Predicated region
        $region41: #{_mlp_forward_impl.1} parent=39 // pred_check
          %p239 = pneg %p34
        $region42: #{_mlp_forward_impl.1} parent=39 // pred_check_branch
          %241 = sbr.rel (%p239) target = $region44
        $region43: #{_mlp_forward_impl.1} parent=39 // pred_region
          %s242 = smul.u32 4, %s14
          %s243 = ssub.s32 7, %s242
          %p244 = scmp.lt.s32.totalorder %s243, 4
          %s245 = scalar_select %p244, %s243, 4
          %s246 = smul.u32 128, %s245
          %p247 = scmp.lt.s32.totalorder %s242, 6
          %s248 = scalar_select %p247, %s242, 6
          %s249 = smul.addr %s248, 8
          %s250 = scalar_lea.vmem %s0, %s249
          %s251 = smul.u32 4, %s14
          %s252 = ssub.s32 7, %s251
          %p253 = scmp.lt.s32.totalorder %s252, 4
          %s254 = scalar_select %p253, %s252, 4
          %s255 = smul.u32 128, %s254
        $region44: #{_mlp_forward_impl.1} parent=39 // pred_fallthru
          _
      $region40: #{_mlp_forward_impl.1} parent=5 // pred_fallthru
        _
      %p256 = scmp.le.s32.totalorder 1, %s14
      %p257 = scmp.lt.s32.totalorder %s14, 3
      %p258 = pnand %p256, %p257
      %p259 = pneg %p258
      // Predicated region
      $region45: #{_mlp_forward_impl.1} parent=5 // pred_check
        _
      $region46: #{_mlp_forward_impl.1} parent=5 // pred_check_branch
        %261 = sbr.rel (%p258) target = $region48
      $region47: #{_mlp_forward_impl.1} parent=5 // pred_region
        %s262 = ssub.s32 %s14, 1
        // Predicated region
        $region49: #{_mlp_forward_impl.1} parent=47 // pred_check
          %p263 = pneg %p145
        $region50: #{_mlp_forward_impl.1} parent=47 // pred_check_branch
          %265 = sbr.rel (%p263) target = $region52
        $region51: #{_mlp_forward_impl.1} parent=47 // pred_region
          %266 = dma.done [#allocation3], 1024
        $region52: #{_mlp_forward_impl.1} parent=47 // pred_fallthru
          _
        %s267 = smul.u32 4, %s19
        %s268 = ssub.s32 7, %s267
        %p269 = scmp.lt.s32.totalorder %s268, 4
        %s270 = scalar_select %p269, %s268, 4
        %s271 = smul.u32 128, %s270
        %p272 = scmp.lt.s32.totalorder %s267, 6
        %s273 = scalar_select %p272, %s267, 6
        %s274 = smul.addr %s273, 8
        %s275 = scalar_lea.vmem %s0, %s274
        %p276 = pneg %p40
        %p277 = pneg %p37
        %p278 = pneg %p61
        %p279 = pneg %p58
        %p280 = pneg %p82
        %p281 = pneg %p79
        %p282 = pneg %p103
        %p283 = pneg %p100
        %p284 = pneg %p124
        %p285 = pneg %p121
        %p286 = pneg %p145
        %p287 = pneg %p142
        %p288 = pneg %p166
        %p289 = pneg %p163
        %p290 = pneg %p192
        %p291 = pneg %p189
        %s292 = sand.u32 %s179, 1
        %s293 = sand.u32 %s179, 1
        %s294 = smul.addr %s293, 16
        %s295 = scalar_lea.vmem [#allocation4], %s294
        %s296 = smul.u32 4, %s19
        %s297 = ssub.s32 7, %s296
        %p298 = scmp.lt.s32.totalorder %s297, 4
        %s299 = scalar_select %p298, %s297, 4
        %s300 = smul.u32 128, %s299
        %p301 = scmp.lt.s32.totalorder %s296, 6
        %s302 = scalar_select %p301, %s296, 6
        %s303 = smul.addr %s302, 8
        %s304 = scalar_lea.vmem %s0, %s303
        %s305 = smul.u32 4, %s19
        %s306 = ssub.s32 7, %s305
        %p307 = scmp.lt.s32.totalorder %s306, 4
        %s308 = scalar_select %p307, %s306, 4
        %s309 = smul.u32 128, %s308
        %s310 = smul.u32 4, %s19
        %s311 = ssub.s32 7, %s310
        %p312 = scmp.lt.s32.totalorder %s311, 4
        %s313 = scalar_select %p312, %s311, 4
        %s314 = smul.u32 64, %s313
        %v316 = vld [vmem:[%s304] sm:$0xff]
        %v317 = vld [vmem:[%s304 + $0x8] sm:$0xff]
        %v318 = vld [vmem:[%s304 + $0x10] sm:$0xff]
        %v319 = vld [vmem:[%s304 + $0x18] sm:$0xff]
        %v320 = vpack.c.bf16 %v317, %v316
        %v321 = vpack.c.bf16 %v319, %v318
        %v322 = vld [vmem:[%s1] sm:$0xf]
        %v323 = vld [vmem:[%s1 + $0x4] sm:$0xf]
        %v324 = vld [vmem:[%s2] sm:$0x1]
        %v326 = vlaneseq
        %v327 = vshrl.u32 %v326, 7
        %v328 = vsub.s32 0, %v327
        %v329 = vrot.slane %v324, %v328
        %v333 = vunpack.c.l.b16 %v322
        %v334 = vunpack.c.l.b16 %v323
        %v335 = vpack.c.b16 %v334, %v333
        %vm337 = vcmask 130048
        %v339 = vsel %vm337, %v320, 0
        %v342 = vsel %vm337, %v321, 0
        %344 = vmatprep.subr.bf16.mxu0 0
        %345 = vmatpush1.bf16.msra.mxu0 %v335
        %346 = vmatprep.subr.bf16.mxu0 0
        %347 = vmatpush1.bf16.msra.mxu0 0
        %348 = vmatprep.subr.bf16.mxu0 0
        %349 = vmatpush1.bf16.msra.mxu0 0
        %350 = vmatprep.subr.bf16.mxu0 0
        %351 = vmatpush1.bf16.msra.mxu0 0
        %352 = vmatprep.subr.bf16.mxu0 0
        %353 = vmatpush1.bf16.msra.mxu0 0
        %354 = vmatprep.subr.bf16.mxu0 0
        %355 = vmatpush1.bf16.msra.mxu0 0
        %356 = vmatprep.subr.bf16.mxu0 0
        %357 = vmatpush1.bf16.msra.mxu0 0
        %358 = vmatprep.subr.bf16.mxu0 0
        %359 = vmatpush1.bf16.msra.mxu0 0
        %360 = vmatprep.subr.bf16.mxu0 0
        %361 = vmatpush1.bf16.msra.mxu0 0
        %362 = vmatprep.subr.bf16.mxu0 0
        %363 = vmatpush1.bf16.msra.mxu0 0
        %364 = vmatprep.subr.bf16.mxu0 0
        %365 = vmatpush1.bf16.msra.mxu0 0
        %366 = vmatprep.subr.bf16.mxu0 0
        %367 = vmatpush1.bf16.msra.mxu0 0
        %368 = vmatprep.subr.bf16.mxu0 0
        %369 = vmatpush1.bf16.msra.mxu0 0
        %370 = vmatprep.subr.bf16.mxu0 0
        %371 = vmatpush1.bf16.msra.mxu0 0
        %372 = vmatprep.subr.bf16.mxu0 0
        %373 = vmatpush1.bf16.msra.mxu0 0
        %374 = vmatprep.subr.bf16.mxu0 0
        %375 = vmatpush1.bf16.msra.mxu0 0
        %376 = vmatprep.mubr.bf16.mxu0 0
        %377 = vmatmul.mubr.bf16.gmra.mrb[0].mxu0 %v339
        %v378 = vpop.f32.mrb[0].mxu0
        %v379 = vadd.f32 %v329, %v378
        %v380 = vpop.f32.mrb[0].mxu0
        %v381 = vpop.f32.mrb[0].mxu0
        %v382 = vadd.f32 %v329, %v381
        %v383 = vpop.f32.mrb[0].mxu0
        %384 = vmatprep.mubr.bf16.mxu0 0
        %385 = vmatmul.mubr.bf16.gmra.mrb[0].mxu0 %v342
        %v386 = vpop.f32.mrb[0].mxu0
        %v387 = vadd.f32 %v329, %v386
        %v388 = vpop.f32.mrb[0].mxu0
        %v389 = vpop.f32.mrb[0].mxu0
        %v390 = vadd.f32 %v329, %v389
        %v391 = vpop.f32.mrb[0].mxu0
        %392 = vdwg.mxu0
        %v393 = vmax.f32 %v379, 0.0
        %v394 = vmax.f32 %v382, 0.0
        %v395 = vmax.f32 %v387, 0.0
        %v396 = vmax.f32 %v390, 0.0
        %v397 = vpack.c.bf16 %v394, %v393
        %v398 = vpack.c.bf16 %v396, %v395
        %v399 = vld [vmem:[%s3] sm:$0xf]
        %v400 = vld [vmem:[%s3 + $0x4] sm:$0xf]
        %v401 = vld [vmem:[%s3 + $0x8] sm:$0xf]
        %v402 = vld [vmem:[%s3 + $0xc] sm:$0xf]
        %v403 = vld [vmem:[%s3 + $0x10] sm:$0xf]
        %v404 = vld [vmem:[%s3 + $0x14] sm:$0xf]
        %v405 = vld [vmem:[%s3 + $0x18] sm:$0xf]
        %v406 = vld [vmem:[%s3 + $0x1c] sm:$0xf]
        %v407 = vld [vmem:[%s3 + $0x20] sm:$0xf]
        %v408 = vld [vmem:[%s3 + $0x24] sm:$0xf]
        %v409 = vld [vmem:[%s3 + $0x28] sm:$0xf]
        %v410 = vld [vmem:[%s3 + $0x2c] sm:$0xf]
        %v411 = vld [vmem:[%s3 + $0x30] sm:$0xf]
        %v412 = vld [vmem:[%s3 + $0x34] sm:$0xf]
        %v413 = vld [vmem:[%s3 + $0x38] sm:$0xf]
        %v414 = vld [vmem:[%s3 + $0x3c] sm:$0xf]
        %v415 = vld [vmem:[%s4] sm:$0x1]
        %v417 = vlaneseq
        %v418 = vshrl.u32 %v417, 7
        %v419 = vsub.s32 0, %v418
        %v420 = vrot.slane %v415, %v419
        %v438 = vunpack.c.l.b16 %v399
        %v439 = vunpack.c.l.b16 %v400
        %v440 = vunpack.c.l.b16 %v401
        %v441 = vunpack.c.l.b16 %v402
        %v442 = vunpack.c.l.b16 %v403
        %v443 = vunpack.c.l.b16 %v404
        %v444 = vunpack.c.l.b16 %v405
        %v445 = vunpack.c.l.b16 %v406
        %v446 = vunpack.c.l.b16 %v407
        %v447 = vunpack.c.l.b16 %v408
        %v448 = vunpack.c.l.b16 %v409
        %v449 = vunpack.c.l.b16 %v410
        %v450 = vunpack.c.l.b16 %v411
        %v451 = vunpack.c.l.b16 %v412
        %v452 = vunpack.c.l.b16 %v413
        %v453 = vunpack.c.l.b16 %v414
        %v454 = vpack.c.b16 %v439, %v438
        %v455 = vpack.c.b16 %v441, %v440
        %v456 = vpack.c.b16 %v443, %v442
        %v457 = vpack.c.b16 %v445, %v444
        %v458 = vpack.c.b16 %v447, %v446
        %v459 = vpack.c.b16 %v449, %v448
        %v460 = vpack.c.b16 %v451, %v450
        %v461 = vpack.c.b16 %v453, %v452
        %470 = vmatprep.subr.bf16.mxu0 0
        %471 = vmatpush1.bf16.msra.mxu0 %v454
        %472 = vmatprep.subr.bf16.mxu0 0
        %473 = vmatpush1.bf16.msra.mxu0 %v455
        %474 = vmatprep.subr.bf16.mxu0 0
        %475 = vmatpush1.bf16.msra.mxu0 %v456
        %476 = vmatprep.subr.bf16.mxu0 0
        %477 = vmatpush1.bf16.msra.mxu0 %v457
        %478 = vmatprep.subr.bf16.mxu0 0
        %479 = vmatpush1.bf16.msra.mxu0 %v458
        %480 = vmatprep.subr.bf16.mxu0 0
        %481 = vmatpush1.bf16.msra.mxu0 %v459
        %482 = vmatprep.subr.bf16.mxu0 0
        %483 = vmatpush1.bf16.msra.mxu0 %v460
        %484 = vmatprep.subr.bf16.mxu0 0
        %485 = vmatpush1.bf16.msra.mxu0 %v461
        %486 = vmatprep.subr.bf16.mxu0 0
        %487 = vmatpush1.bf16.msra.mxu0 0
        %488 = vmatprep.subr.bf16.mxu0 0
        %489 = vmatpush1.bf16.msra.mxu0 0
        %490 = vmatprep.subr.bf16.mxu0 0
        %491 = vmatpush1.bf16.msra.mxu0 0
        %492 = vmatprep.subr.bf16.mxu0 0
        %493 = vmatpush1.bf16.msra.mxu0 0
        %494 = vmatprep.subr.bf16.mxu0 0
        %495 = vmatpush1.bf16.msra.mxu0 0
        %496 = vmatprep.subr.bf16.mxu0 0
        %497 = vmatpush1.bf16.msra.mxu0 0
        %498 = vmatprep.subr.bf16.mxu0 0
        %499 = vmatpush1.bf16.msra.mxu0 0
        %500 = vmatprep.subr.bf16.mxu0 0
        %501 = vmatpush1.bf16.msra.mxu0 0
        %502 = vmatprep.mubr.bf16.mxu0 0
        %503 = vmatmul.mubr.bf16.gmra.mrb[0].mxu0 %v397
        %v504 = vpop.f32.mrb[0].mxu0
        %v505 = vadd.f32 %v420, %v504
        %v506 = vpop.f32.mrb[0].mxu0
        %v507 = vpop.f32.mrb[0].mxu0
        %v508 = vadd.f32 %v420, %v507
        %v509 = vpop.f32.mrb[0].mxu0
        %510 = vmatprep.mubr.bf16.mxu0 0
        %511 = vmatmul.mubr.bf16.gmra.mrb[0].mxu0 %v398
        %v512 = vpop.f32.mrb[0].mxu0
        %v513 = vadd.f32 %v420, %v512
        %v514 = vpop.f32.mrb[0].mxu0
        %v515 = vpop.f32.mrb[0].mxu0
        %v516 = vadd.f32 %v420, %v515
        %v517 = vpop.f32.mrb[0].mxu0
        %518 = vdwg.mxu0
        %v519 = vmax.f32 %v505, 0.0
        %v520 = vmax.f32 %v508, 0.0
        %v521 = vmax.f32 %v513, 0.0
        %v522 = vmax.f32 %v516, 0.0
        %v523 = vpack.c.bf16 %v520, %v519
        %v524 = vpack.c.bf16 %v522, %v521
        %v525 = vld [vmem:[#allocation2] sm:$0xf]
        %v526 = vld [vmem:[#allocation2 + $0x4] sm:$0xf]
        %v527 = vld [vmem:[#allocation2 + $0x8] sm:$0xf]
        %v528 = vld [vmem:[#allocation2 + $0xc] sm:$0xf]
        %v529 = vld [vmem:[#allocation2 + $0x10] sm:$0xf]
        %v530 = vld [vmem:[#allocation2 + $0x14] sm:$0xf]
        %v531 = vld [vmem:[#allocation2 + $0x18] sm:$0xf]
        %v532 = vld [vmem:[#allocation2 + $0x1c] sm:$0xf]
        %v533 = vld [vmem:[#allocation2 + $0x20] sm:$0xf]
        %v534 = vld [vmem:[#allocation2 + $0x24] sm:$0xf]
        %v535 = vld [vmem:[#allocation2 + $0x28] sm:$0xf]
        %v536 = vld [vmem:[#allocation2 + $0x2c] sm:$0xf]
        %v537 = vld [vmem:[#allocation2 + $0x30] sm:$0xf]
        %v538 = vld [vmem:[#allocation2 + $0x34] sm:$0xf]
        %v539 = vld [vmem:[#allocation2 + $0x38] sm:$0xf]
        %v540 = vld [vmem:[#allocation2 + $0x3c] sm:$0xf]
        %v541 = vld [vmem:[%s6] sm:$0x1]
        %v543 = vlaneseq
        %v544 = vshrl.u32 %v543, 7
        %v545 = vsub.s32 0, %v544
        %v546 = vrot.slane %v541, %v545
        %v564 = vunpack.c.l.b16 %v525
        %v565 = vunpack.c.l.b16 %v526
        %v566 = vunpack.c.l.b16 %v527
        %v567 = vunpack.c.l.b16 %v528
        %v568 = vunpack.c.l.b16 %v529
        %v569 = vunpack.c.l.b16 %v530
        %v570 = vunpack.c.l.b16 %v531
        %v571 = vunpack.c.l.b16 %v532
        %v572 = vunpack.c.l.b16 %v533
        %v573 = vunpack.c.l.b16 %v534
        %v574 = vunpack.c.l.b16 %v535
        %v575 = vunpack.c.l.b16 %v536
        %v576 = vunpack.c.l.b16 %v537
        %v577 = vunpack.c.l.b16 %v538
        %v578 = vunpack.c.l.b16 %v539
        %v579 = vunpack.c.l.b16 %v540
        %v580 = vpack.c.b16 %v565, %v564
        %v581 = vpack.c.b16 %v567, %v566
        %v582 = vpack.c.b16 %v569, %v568
        %v583 = vpack.c.b16 %v571, %v570
        %v584 = vpack.c.b16 %v573, %v572
        %v585 = vpack.c.b16 %v575, %v574
        %v586 = vpack.c.b16 %v577, %v576
        %v587 = vpack.c.b16 %v579, %v578
        %596 = vmatprep.subr.bf16.mxu0 0
        %597 = vmatpush1.bf16.msra.mxu0 %v580
        %598 = vmatprep.subr.bf16.mxu0 0
        %599 = vmatpush1.bf16.msra.mxu0 %v581
        %600 = vmatprep.subr.bf16.mxu0 0
        %601 = vmatpush1.bf16.msra.mxu0 %v582
        %602 = vmatprep.subr.bf16.mxu0 0
        %603 = vmatpush1.bf16.msra.mxu0 %v583
        %604 = vmatprep.subr.bf16.mxu0 0
        %605 = vmatpush1.bf16.msra.mxu0 %v584
        %606 = vmatprep.subr.bf16.mxu0 0
        %607 = vmatpush1.bf16.msra.mxu0 %v585
        %608 = vmatprep.subr.bf16.mxu0 0
        %609 = vmatpush1.bf16.msra.mxu0 %v586
        %610 = vmatprep.subr.bf16.mxu0 0
        %611 = vmatpush1.bf16.msra.mxu0 %v587
        %612 = vmatprep.subr.bf16.mxu0 0
        %613 = vmatpush1.bf16.msra.mxu0 0
        %614 = vmatprep.subr.bf16.mxu0 0
        %615 = vmatpush1.bf16.msra.mxu0 0
        %616 = vmatprep.subr.bf16.mxu0 0
        %617 = vmatpush1.bf16.msra.mxu0 0
        %618 = vmatprep.subr.bf16.mxu0 0
        %619 = vmatpush1.bf16.msra.mxu0 0
        %620 = vmatprep.subr.bf16.mxu0 0
        %621 = vmatpush1.bf16.msra.mxu0 0
        %622 = vmatprep.subr.bf16.mxu0 0
        %623 = vmatpush1.bf16.msra.mxu0 0
        %624 = vmatprep.subr.bf16.mxu0 0
        %625 = vmatpush1.bf16.msra.mxu0 0
        %626 = vmatprep.subr.bf16.mxu0 0
        %627 = vmatpush1.bf16.msra.mxu0 0
        %628 = vmatprep.mubr.bf16.mxu0 0
        %629 = vmatmul.mubr.bf16.gmra.mrb[0].mxu0 %v523
        %v630 = vpop.f32.mrb[0].mxu0
        %v631 = vadd.f32 %v546, %v630
        %v632 = vpop.f32.mrb[0].mxu0
        %v633 = vpop.f32.mrb[0].mxu0
        %v634 = vadd.f32 %v546, %v633
        %v635 = vpop.f32.mrb[0].mxu0
        %636 = vmatprep.mubr.bf16.mxu0 0
        %637 = vmatmul.mubr.bf16.gmra.mrb[0].mxu0 %v524
        %v638 = vpop.f32.mrb[0].mxu0
        %v639 = vadd.f32 %v546, %v638
        %v640 = vpop.f32.mrb[0].mxu0
        %v641 = vpop.f32.mrb[0].mxu0
        %v642 = vadd.f32 %v546, %v641
        %v643 = vpop.f32.mrb[0].mxu0
        %644 = vdwg.mxu0
        %v645 = vpack.c.bf16 %v634, %v631
        %v646 = vpack.c.bf16 %v642, %v639
        %v649 = vunpack.c.l.b16 %v645
        %v650 = vunpack.c.h.b16 %v645
        %v651 = vunpack.c.l.b16 %v646
        %v652 = vunpack.c.h.b16 %v646
        %v653 = vpack.c.b16 %v649, %v649
        %v654 = vpack.c.b16 %v650, %v650
        %v655 = vpack.c.b16 %v651, %v651
        %v656 = vpack.c.b16 %v652, %v652
        %661 = vst [vmem:[%s295] sm:$0xf] %v653
        %662 = vst [vmem:[%s295 + $0x4] sm:$0xf] %v654
        %663 = vst [vmem:[%s295 + $0x8] sm:$0xf] %v655
        %664 = vst [vmem:[%s295 + $0xc] sm:$0xf] %v656
        %s665 = sand.u32 %s179, 1
        %s666 = sand.u32 %s179, 1
        %s667 = smul.addr %s666, 16
        %s668 = scalar_lea.vmem [#allocation4], %s667
        // Predicated region
        $region53: #{_mlp_forward_impl.1} parent=47 // pred_check
          %p669 = pneg %p189
        $region54: #{_mlp_forward_impl.1} parent=47 // pred_check_branch
          %671 = sbr.rel (%p669) target = $region56
        $region55: #{_mlp_forward_impl.1} parent=47 // pred_region
          %s672 = smul.u32 4, %s19
          %s673 = ssub.s32 7, %s672
          %p674 = scmp.lt.s32.totalorder %s673, 4
          %s675 = scalar_select %p674, %s673, 4
          %s676 = smul.u32 64, %s675
          %p677 = scmp.ne.s32.totalorder 0, %s676
          %s678 = smul.addr %s672, 4
          %s679 = scalar_lea.vmem %s7, %s678
          // Predicated region
          $region57: #{_mlp_forward_impl.1} parent=55 // pred_check
            %p680 = pneg %p677
          $region58: #{_mlp_forward_impl.1} parent=55 // pred_check_branch
            %682 = sbr.rel (%p680) target = $region60
          $region59: #{_mlp_forward_impl.1} parent=55 // pred_region
            // Predicated region
            $region61: #{_mlp_forward_impl.1} parent=59 // pred_check
              _
            $region62: #{_mlp_forward_impl.1} parent=59 // pred_check_branch
              %684 = sbr.rel target = $region64
            $region63: #{_mlp_forward_impl.1} parent=59 // pred_region
              // Predicated region
              $region83: #{_mlp_forward_impl.1} parent=63 // pred_check
                _
              $region84: #{_mlp_forward_impl.1} parent=63 // pred_check_branch
                %739 = sbr.rel (0) target = $region86
              $region85: #{_mlp_forward_impl.1} parent=63 // pred_region
                %s741 = sshrl.u32 %s675, 2
                // While loop
                $region87: #{_mlp_forward_impl.1} parent=85 // loop_pre_header
                  _
                $region88: #{_mlp_forward_impl.1} parent=85 // loop_header
                  %s743 = sphi 0, %s745
                  %p744 = scmp.ge.s32.totalorder %s743, %s741
                  %s748 = sphi 0, %s761
                  %s749 = sphi %s668, %s764
                  %s750 = sphi %s679, %s765
                $region89: #{_mlp_forward_impl.1} parent=85 // loop_header_branch
                  %747 = sbr.rel (%p744) target = $region93
                $region90: #{_mlp_forward_impl.1} parent=85 // loop_body
                  %v751 = vld [vmem:[%s749] sm:$0xf]
                  %752 = vst [vmem:[%s750] sm:$0xf] %v751
                  %v753 = vld [vmem:[%s749 + $0x4] sm:$0xf]
                  %754 = vst [vmem:[%s750 + $0x4] sm:$0xf] %v753
                  %v755 = vld [vmem:[%s749 + $0x8] sm:$0xf]
                  %756 = vst [vmem:[%s750 + $0x8] sm:$0xf] %v755
                  %v757 = vld [vmem:[%s749 + $0xc] sm:$0xf]
                  %758 = vst [vmem:[%s750 + $0xc] sm:$0xf] %v757
                  %s759 = sadd.s32 1, %s748
                  %p760 = scmp.ge.s32.totalorder %s759, %s741
                  %s761 = scalar_select %p760, 0, %s759
                  %s762 = smul.u32 %s761, 16
                  %s763 = smul.u32 %s761, 16
                  %s764 = scalar_lea.vmem %s668, %s762 [#allocation4]
                  %s765 = scalar_lea.vmem %s679, %s763
                $region91: #{_mlp_forward_impl.1} parent=85 // loop_footer
                  %s745 = sadd.s32 %s743, 1
                $region92: #{_mlp_forward_impl.1} parent=85 // loop_footer_branch
                  %742 = sbr.rel target = $region88
                $region93: #{_mlp_forward_impl.1} parent=85 // loop_exit
                  _
                %s766 = sshrl.u32 %s675, 2
                %s767 = sand.u32 %s675, 3
                %s768 = smul.u32 %s766, 4
                %s769 = smul.u32 4, %s768
                %s770 = scalar_lea.vmem %s668, %s769 [#allocation4]
                %s771 = smul.u32 4, %s768
                %s772 = scalar_lea.vmem %s679, %s771
                // While loop
                $region94: #{_mlp_forward_impl.1} parent=85 // loop_pre_header
                  _
                $region95: #{_mlp_forward_impl.1} parent=85 // loop_header
                  %s774 = sphi 0, %s776
                  %p775 = scmp.ge.s32.totalorder %s774, %s767
                  %s779 = sphi 0, %s786
                  %s780 = sphi %s770, %s789
                  %s781 = sphi %s772, %s790
                $region96: #{_mlp_forward_impl.1} parent=85 // loop_header_branch
                  %778 = sbr.rel (%p775) target = $region100
                $region97: #{_mlp_forward_impl.1} parent=85 // loop_body
                  %v782 = vld [vmem:[%s780] sm:$0xf]
                  %783 = vst [vmem:[%s781] sm:$0xf] %v782
                  %s784 = sadd.s32 1, %s779
                  %p785 = scmp.ge.s32.totalorder %s784, %s767
                  %s786 = scalar_select %p785, 0, %s784
                  %s787 = smul.u32 %s786, 4
                  %s788 = smul.u32 %s786, 4
                  %s789 = scalar_lea.vmem %s770, %s787 [#allocation4]
                  %s790 = scalar_lea.vmem %s772, %s788
                $region98: #{_mlp_forward_impl.1} parent=85 // loop_footer
                  %s776 = sadd.s32 %s774, 1
                $region99: #{_mlp_forward_impl.1} parent=85 // loop_footer_branch
                  %773 = sbr.rel target = $region95
                $region100: #{_mlp_forward_impl.1} parent=85 // loop_exit
                  _
              $region86: #{_mlp_forward_impl.1} parent=63 // pred_fallthru
                _
            $region64: #{_mlp_forward_impl.1} parent=59 // pred_fallthru
              _
            // Predicated region
            $region65: #{_mlp_forward_impl.1} parent=59 // pred_check
              _
            $region66: #{_mlp_forward_impl.1} parent=59 // pred_check_branch
              %686 = sbr.rel (0) target = $region68
            $region67: #{_mlp_forward_impl.1} parent=59 // pred_region
              %s688 = sshrl.u32 %s675, 2
              // While loop
              $region69: #{_mlp_forward_impl.1} parent=67 // loop_pre_header
                _
              $region70: #{_mlp_forward_impl.1} parent=67 // loop_header
                %s690 = sphi 0, %s692
                %p691 = scmp.ge.s32.totalorder %s690, %s688
                %s695 = sphi 0, %s708
                %s696 = sphi %s668, %s711
                %s697 = sphi %s679, %s712
              $region71: #{_mlp_forward_impl.1} parent=67 // loop_header_branch
                %694 = sbr.rel (%p691) target = $region75
              $region72: #{_mlp_forward_impl.1} parent=67 // loop_body
                %v698 = vld [vmem:[%s696] sm:$0xf]
                %699 = vst [vmem:[%s697] sm:$0xf] %v698
                %v700 = vld [vmem:[%s696 + $0x4] sm:$0xf]
                %701 = vst [vmem:[%s697 + $0x4] sm:$0xf] %v700
                %v702 = vld [vmem:[%s696 + $0x8] sm:$0xf]
                %703 = vst [vmem:[%s697 + $0x8] sm:$0xf] %v702
                %v704 = vld [vmem:[%s696 + $0xc] sm:$0xf]
                %705 = vst [vmem:[%s697 + $0xc] sm:$0xf] %v704
                %s706 = sadd.s32 1, %s695
                %p707 = scmp.ge.s32.totalorder %s706, %s688
                %s708 = scalar_select %p707, 0, %s706
                %s709 = smul.u32 %s708, 16
                %s710 = smul.u32 %s708, 16
                %s711 = scalar_lea.vmem %s668, %s709 [#allocation4]
                %s712 = scalar_lea.vmem %s679, %s710
              $region73: #{_mlp_forward_impl.1} parent=67 // loop_footer
                %s692 = sadd.s32 %s690, 1
              $region74: #{_mlp_forward_impl.1} parent=67 // loop_footer_branch
                %689 = sbr.rel target = $region70
              $region75: #{_mlp_forward_impl.1} parent=67 // loop_exit
                _
              %s713 = sshrl.u32 %s675, 2
              %s714 = sand.u32 %s675, 3
              %s715 = smul.u32 %s713, 4
              %s716 = smul.u32 4, %s715
              %s717 = scalar_lea.vmem %s668, %s716 [#allocation4]
              %s718 = smul.u32 4, %s715
              %s719 = scalar_lea.vmem %s679, %s718
              // While loop
              $region76: #{_mlp_forward_impl.1} parent=67 // loop_pre_header
                _
              $region77: #{_mlp_forward_impl.1} parent=67 // loop_header
                %s721 = sphi 0, %s723
                %p722 = scmp.ge.s32.totalorder %s721, %s714
                %s726 = sphi 0, %s733
                %s727 = sphi %s717, %s736
                %s728 = sphi %s719, %s737
              $region78: #{_mlp_forward_impl.1} parent=67 // loop_header_branch
                %725 = sbr.rel (%p722) target = $region82
              $region79: #{_mlp_forward_impl.1} parent=67 // loop_body
                %v729 = vld [vmem:[%s727] sm:$0xf]
                %730 = vst [vmem:[%s728] sm:$0xf] %v729
                %s731 = sadd.s32 1, %s726
                %p732 = scmp.ge.s32.totalorder %s731, %s714
                %s733 = scalar_select %p732, 0, %s731
                %s734 = smul.u32 %s733, 4
                %s735 = smul.u32 %s733, 4
                %s736 = scalar_lea.vmem %s717, %s734 [#allocation4]
                %s737 = scalar_lea.vmem %s719, %s735
              $region80: #{_mlp_forward_impl.1} parent=67 // loop_footer
                %s723 = sadd.s32 %s721, 1
              $region81: #{_mlp_forward_impl.1} parent=67 // loop_footer_branch
                %720 = sbr.rel target = $region77
              $region82: #{_mlp_forward_impl.1} parent=67 // loop_exit
                _
            $region68: #{_mlp_forward_impl.1} parent=59 // pred_fallthru
              _
          $region60: #{_mlp_forward_impl.1} parent=55 // pred_fallthru
            _
          %791 = vnop
        $region56: #{_mlp_forward_impl.1} parent=47 // pred_fallthru
          _
      $region48: #{_mlp_forward_impl.1} parent=5 // pred_fallthru
        _
      %p792 = scmp.le.s32.totalorder 2, %s14
      // Predicated region
      $region101: #{_mlp_forward_impl.1} parent=5 // pred_check
        %p793 = pneg %p792
      $region102: #{_mlp_forward_impl.1} parent=5 // pred_check_branch
        %795 = sbr.rel (%p793) target = $region104
      $region103: #{_mlp_forward_impl.1} parent=5 // pred_region
        %s796 = ssub.s32 %s14, 2
        // Predicated region
        $region105: #{_mlp_forward_impl.1} parent=103 // pred_check
          %p797 = pneg %p195
        $region106: #{_mlp_forward_impl.1} parent=103 // pred_check_branch
          %799 = sbr.rel (%p797) target = $region108
        $region107: #{_mlp_forward_impl.1} parent=103 // pred_region
          %s800 = sand.u32 %s180, 1
          %s801 = sand.u32 %s180, 1
          %s802 = smul.addr %s801, 16
          %s803 = scalar_lea.vmem [#allocation4], %s802
        $region108: #{_mlp_forward_impl.1} parent=103 // pred_fallthru
          _
      $region104: #{_mlp_forward_impl.1} parent=5 // pred_fallthru
        _
    $region6: #{_mlp_forward_impl.1} parent=1 // loop_footer
      %s18 = sadd.s32 1, %s14
    $region7: #{_mlp_forward_impl.1} parent=1 // loop_footer_branch
      %13 = sbr.rel target = $region3
    $region8: #{_mlp_forward_impl.1} parent=1 // loop_exit
      _
    %804 = vsyncpa [#allocation3], 1
    %s805 = scalar_lea.sflag [#allocation3], 1
    %806 = vsyncpa %s805, 1

// kernel: _mlp_forward_impl.1
$region0: #{_mlp_forward_impl.1}
  #allocation0 [shape = 'u32[]', space=smem, size = 0x4, offset = 0x4, fixed_abs, tag = 'smem constant byte address 0x4 - core index']
  #allocation1 [shape = 'u32[144,128]{1,0:T(1,128)}', space=vmem, size = 0x12000, scoped, tag = 'internal scratch']
  %s0 = inlined_call_operand.vmem [shape: f32[50,16], index: 0, kind: input, shape index: {}]
  %s1 = inlined_call_operand.vmem [shape: bf16[16,128], index: 1, kind: input, shape index: {}]
  %s2 = inlined_call_operand.vmem [shape: f32[1,128], index: 2, kind: input, shape index: {}]
  %s3 = inlined_call_operand.vmem [shape: bf16[128,128], index: 3, kind: input, shape index: {}]
  %s4 = inlined_call_operand.vmem [shape: f32[1,128], index: 4, kind: input, shape index: {}]
  %s5 = inlined_call_operand.hbm [shape: bf16[128,128], index: 5, kind: input, shape index: {}]
  %s6 = inlined_call_operand.vmem [shape: f32[1,128], index: 6, kind: input, shape index: {}]
  %s7 = inlined_call_operand.vmem [shape: bf16[50,128], index: 7, kind: output, shape index: {}]
  %s8 = sld [smem:[#allocation0]]
  $region109: #{_mlp_forward_impl.1} parent=0
    _
  %s10 = ssub.s32 1, %s8
  %s11 = scalar_select 0, %s10, %s8
  $region1: #{_mlp_forward_impl.1} parent=0
    #allocation2 [shape = 'u8[32768]{0}', space=vmem, size = 0x8000, scoped, tag = 'input window, operand 5, single buffered']
    #allocation3 [shape = 's32[2]{0}', space=sflag, size = 0x8, scoped, tag = 'scoped memory for _mlp_forward_impl.1']
    #allocation4 [shape = 'u8[16384]{0}', space=vmem, size = 0x4000, scoped, tag = 'output window, operand 0']
    %12 = vsyncpa [#allocation3], 0
    loop: start=0, step=1, limit=4
    $region2: #{_mlp_forward_impl.1} parent=1 // loop_pre_header
      _
    $region3: #{_mlp_forward_impl.1} parent=1 // loop_header
      %s14 = sphi 0, %s18
      %p15 = scmp.ge.s32.totalorder %s14, 4
      %s24 = sphi 0, %s26
      %s27 = sphi 0, %s24
      %s28 = sphi 0, %s27
      %s44 = sphi 0, %s28
      %s48 = sphi 0, %s48
      %s50 = sphi 0, %s48
      %s51 = sphi 0, %s50
      %s65 = sphi 0, %s51
      %s69 = sphi 0, %s69
      %s71 = sphi 0, %s69
      %s72 = sphi 0, %s71
      %s86 = sphi 0, %s72
      %s90 = sphi 0, %s90
      %s92 = sphi 0, %s90
      %s93 = sphi 0, %s92
      %s107 = sphi 0, %s93
      %s111 = sphi 0, %s111
      %s113 = sphi 0, %s111
      %s114 = sphi 0, %s113
      %s128 = sphi 0, %s114
      %s132 = sphi 0, %s132
      %s134 = sphi 0, %s132
      %s135 = sphi 0, %s134
      %s149 = sphi 0, %s135
      %s153 = sphi 0, %s153
      %s155 = sphi 0, %s153
      %s156 = sphi 0, %s155
      %s170 = sphi 0, %s156
      %s176 = sphi 0, %s178
      %s179 = sphi 0, %s176
      %s180 = sphi 0, %s179
      %s196 = sphi 0, %s180
    $region4: #{_mlp_forward_impl.1} parent=1 // loop_header_branch
      %17 = sbr.rel (%p15) target = $region8
    $region5: #{_mlp_forward_impl.1} parent=1 // loop_body
      %s19 = ssub.s32 %s14, 1
      %s20 = ssub.s32 %s14, 2
      %s21 = sadd.s32 %s14, 1
      %s22 = ssub.s32 %s14, %s21
      %p23 = scmp.eq.s32.totalorder %s22, 0
      %s25 = sadd.s32 %s24, 1
      %s26 = scalar_select %p23, %s24, %s25
      %p29 = pneg %p23
      %p30 = scmp.eq.s32.totalorder %s14, 1
      %p31 = por %p29, %p30
      %p32 = scmp.ne.s32.totalorder %s24, %s27
      %p33 = scmp.eq.s32.totalorder %s14, 0
      %p34 = por %p32, %p33
      %p35 = scmp.ne.s32.totalorder %s24, %s27
      %p36 = scmp.eq.s32.totalorder %s19, 1
      %p37 = por %p35, %p36
      %p38 = scmp.ne.s32.totalorder %s27, %s28
      %p39 = scmp.eq.s32.totalorder %s19, 0
      %p40 = por %p38, %p39
      %p41 = scmp.ne.s32.totalorder %s27, %s28
      %p42 = scmp.eq.s32.totalorder %s20, 1
      %p43 = por %p41, %p42
      %p45 = scmp.ne.s32.totalorder %s28, %s44
      %p46 = scmp.eq.s32.totalorder %s20, 0
      %p47 = por %p45, %p46
      %s49 = sadd.s32 %s48, 1
      %p52 = scmp.eq.s32.totalorder %s14, 1
      %p53 = scmp.ne.s32.totalorder %s48, %s50
      %p54 = scmp.eq.s32.totalorder %s14, 0
      %p55 = por %p53, %p54
      %p56 = scmp.ne.s32.totalorder %s48, %s50
      %p57 = scmp.eq.s32.totalorder %s19, 1
      %p58 = por %p56, %p57
      %p59 = scmp.ne.s32.totalorder %s50, %s51
      %p60 = scmp.eq.s32.totalorder %s19, 0
      %p61 = por %p59, %p60
      %p62 = scmp.ne.s32.totalorder %s50, %s51
      %p63 = scmp.eq.s32.totalorder %s20, 1
      %p64 = por %p62, %p63
      %p66 = scmp.ne.s32.totalorder %s51, %s65
      %p67 = scmp.eq.s32.totalorder %s20, 0
      %p68 = por %p66, %p67
      %s70 = sadd.s32 %s69, 1
      %p73 = scmp.eq.s32.totalorder %s14, 1
      %p74 = scmp.ne.s32.totalorder %s69, %s71
      %p75 = scmp.eq.s32.totalorder %s14, 0
      %p76 = por %p74, %p75
      %p77 = scmp.ne.s32.totalorder %s69, %s71
      %p78 = scmp.eq.s32.totalorder %s19, 1
      %p79 = por %p77, %p78
      %p80 = scmp.ne.s32.totalorder %s71, %s72
      %p81 = scmp.eq.s32.totalorder %s19, 0
      %p82 = por %p80, %p81
      %p83 = scmp.ne.s32.totalorder %s71, %s72
      %p84 = scmp.eq.s32.totalorder %s20, 1
      %p85 = por %p83, %p84
      %p87 = scmp.ne.s32.totalorder %s72, %s86
      %p88 = scmp.eq.s32.totalorder %s20, 0
      %p89 = por %p87, %p88
      %s91 = sadd.s32 %s90, 1
      %p94 = scmp.eq.s32.totalorder %s14, 1
      %p95 = scmp.ne.s32.totalorder %s90, %s92
      %p96 = scmp.eq.s32.totalorder %s14, 0
      %p97 = por %p95, %p96
      %p98 = scmp.ne.s32.totalorder %s90, %s92
      %p99 = scmp.eq.s32.totalorder %s19, 1
      %p100 = por %p98, %p99
      %p101 = scmp.ne.s32.totalorder %s92, %s93
      %p102 = scmp.eq.s32.totalorder %s19, 0
      %p103 = por %p101, %p102
      %p104 = scmp.ne.s32.totalorder %s92, %s93
      %p105 = scmp.eq.s32.totalorder %s20, 1
      %p106 = por %p104, %p105
      %p108 = scmp.ne.s32.totalorder %s93, %s107
      %p109 = scmp.eq.s32.totalorder %s20, 0
      %p110 = por %p108, %p109
      %s112 = sadd.s32 %s111, 1
      %p115 = scmp.eq.s32.totalorder %s14, 1
      %p116 = scmp.ne.s32.totalorder %s111, %s113
      %p117 = scmp.eq.s32.totalorder %s14, 0
      %p118 = por %p116, %p117
      %p119 = scmp.ne.s32.totalorder %s111, %s113
      %p120 = scmp.eq.s32.totalorder %s19, 1
      %p121 = por %p119, %p120
      %p122 = scmp.ne.s32.totalorder %s113, %s114
      %p123 = scmp.eq.s32.totalorder %s19, 0
      %p124 = por %p122, %p123
      %p125 = scmp.ne.s32.totalorder %s113, %s114
      %p126 = scmp.eq.s32.totalorder %s20, 1
      %p127 = por %p125, %p126
      %p129 = scmp.ne.s32.totalorder %s114, %s128
      %p130 = scmp.eq.s32.totalorder %s20, 0
      %p131 = por %p129, %p130
      %s133 = sadd.s32 %s132, 1
      %p136 = scmp.eq.s32.totalorder %s14, 1
      %p137 = scmp.ne.s32.totalorder %s132, %s134
      %p138 = scmp.eq.s32.totalorder %s14, 0
      %p139 = por %p137, %p138
      %p140 = scmp.ne.s32.totalorder %s132, %s134
      %p141 = scmp.eq.s32.totalorder %s19, 1
      %p142 = por %p140, %p141
      %p143 = scmp.ne.s32.totalorder %s134, %s135
      %p144 = scmp.eq.s32.totalorder %s19, 0
      %p145 = por %p143, %p144
      %p146 = scmp.ne.s32.totalorder %s134, %s135
      %p147 = scmp.eq.s32.totalorder %s20, 1
      %p148 = por %p146, %p147
      %p150 = scmp.ne.s32.totalorder %s135, %s149
      %p151 = scmp.eq.s32.totalorder %s20, 0
      %p152 = por %p150, %p151
      %s154 = sadd.s32 %s153, 1
      %p157 = scmp.eq.s32.totalorder %s14, 1
      %p158 = scmp.ne.s32.totalorder %s153, %s155
      %p159 = scmp.eq.s32.totalorder %s14, 0
      %p160 = por %p158, %p159
      %p161 = scmp.ne.s32.totalorder %s153, %s155
      %p162 = scmp.eq.s32.totalorder %s19, 1
      %p163 = por %p161, %p162
      %p164 = scmp.ne.s32.totalorder %s155, %s156
      %p165 = scmp.eq.s32.totalorder %s19, 0
      %p166 = por %p164, %p165
      %p167 = scmp.ne.s32.totalorder %s155, %s156
      %p168 = scmp.eq.s32.totalorder %s20, 1
      %p169 = por %p167, %p168
      %p171 = scmp.ne.s32.totalorder %s156, %s170
      %p172 = scmp.eq.s32.totalorder %s20, 0
      %p173 = por %p171, %p172
      %s174 = ssub.s32 %s14, %s21
      %p175 = scmp.eq.s32.totalorder %s174, 0
      %s177 = sadd.s32 %s176, 1
      %s178 = scalar_select %p175, %s176, %s177
      %p181 = pneg %p175
      %p182 = scmp.eq.s32.totalorder %s14, 1
      %p183 = por %p181, %p182
      %p184 = scmp.ne.s32.totalorder %s176, %s179
      %p185 = scmp.eq.s32.totalorder %s14, 0
      %p186 = por %p184, %p185
      %p187 = scmp.ne.s32.totalorder %s176, %s179
      %p188 = scmp.eq.s32.totalorder %s19, 1
      %p189 = por %p187, %p188
      %p190 = scmp.ne.s32.totalorder %s179, %s180
      %p191 = scmp.eq.s32.totalorder %s19, 0
      %p192 = por %p190, %p191
      %p193 = scmp.ne.s32.totalorder %s179, %s180
      %p194 = scmp.eq.s32.totalorder %s20, 1
      %p195 = por %p193, %p194
      %p197 = scmp.ne.s32.totalorder %s180, %s196
      %p198 = scmp.eq.s32.totalorder %s20, 0
      %p199 = por %p197, %p198
      %p200 = scmp.le.s32.totalorder 1, %s14
      %p201 = scmp.lt.s32.totalorder %s14, 3
      %p202 = pnand %p200, %p201
      %p203 = pneg %p202
      // Predicated region
      $region9: #{_mlp_forward_impl.1} parent=5 // pred_check
        _
      $region10: #{_mlp_forward_impl.1} parent=5 // pred_check_branch
        %205 = sbr.rel (%p202) target = $region12
      $region11: #{_mlp_forward_impl.1} parent=5 // pred_region
        %s206 = ssub.s32 %s14, 1
        // Predicated region
        $region13: #{_mlp_forward_impl.1} parent=11 // pred_check
          %p207 = pneg %p61
        $region14: #{_mlp_forward_impl.1} parent=11 // pred_check_branch
          %209 = sbr.rel (%p207) target = $region16
        $region15: #{_mlp_forward_impl.1} parent=11 // pred_region
          _
        $region16: #{_mlp_forward_impl.1} parent=11 // pred_fallthru
          _
        // Predicated region
        $region17: #{_mlp_forward_impl.1} parent=11 // pred_check
          %p210 = pneg %p82
        $region18: #{_mlp_forward_impl.1} parent=11 // pred_check_branch
          %212 = sbr.rel (%p210) target = $region20
        $region19: #{_mlp_forward_impl.1} parent=11 // pred_region
          _
        $region20: #{_mlp_forward_impl.1} parent=11 // pred_fallthru
          _
        // Predicated region
        $region21: #{_mlp_forward_impl.1} parent=11 // pred_check
          %p213 = pneg %p103
        $region22: #{_mlp_forward_impl.1} parent=11 // pred_check_branch
          %215 = sbr.rel (%p213) target = $region24
        $region23: #{_mlp_forward_impl.1} parent=11 // pred_region
          _
        $region24: #{_mlp_forward_impl.1} parent=11 // pred_fallthru
          _
        // Predicated region
        $region25: #{_mlp_forward_impl.1} parent=11 // pred_check
          %p216 = pneg %p124
        $region26: #{_mlp_forward_impl.1} parent=11 // pred_check_branch
          %218 = sbr.rel (%p216) target = $region28
        $region27: #{_mlp_forward_impl.1} parent=11 // pred_region
          _
        $region28: #{_mlp_forward_impl.1} parent=11 // pred_fallthru
          _
        // Predicated region
        $region29: #{_mlp_forward_impl.1} parent=11 // pred_check
          %p219 = pneg %p145
        $region30: #{_mlp_forward_impl.1} parent=11 // pred_check_branch
          %221 = sbr.rel (%p219) target = $region32
        $region31: #{_mlp_forward_impl.1} parent=11 // pred_region
          %s223 = ssub.s32 1024, 1024
          %224 = vsyncadd [#allocation3], %s223
          %s225 = sshll.u32 [#allocation2], 4
          %s226 = int_to_ptr.vmem [resolvable:$true] %s225
          %231 = dma.hbm_to_vmem [thread:$0]  %s5, 1024, %s226, [#allocation3], 64, 64, 4
        $region32: #{_mlp_forward_impl.1} parent=11 // pred_fallthru
          _
        // Predicated region
        $region33: #{_mlp_forward_impl.1} parent=11 // pred_check
          %p232 = pneg %p166
        $region34: #{_mlp_forward_impl.1} parent=11 // pred_check_branch
          %234 = sbr.rel (%p232) target = $region36
        $region35: #{_mlp_forward_impl.1} parent=11 // pred_region
          _
        $region36: #{_mlp_forward_impl.1} parent=11 // pred_fallthru
          _
      $region12: #{_mlp_forward_impl.1} parent=5 // pred_fallthru
        _
      %p235 = scmp.lt.s32.totalorder %s14, 2
      // Predicated region
      $region37: #{_mlp_forward_impl.1} parent=5 // pred_check
        %p236 = pneg %p235
      $region38: #{_mlp_forward_impl.1} parent=5 // pred_check_branch
        %238 = sbr.rel (%p236) target = $region40
      $region39: #{_mlp_forward_impl.1} parent=5 // pred_region
        // Predicated region
        $region41: #{_mlp_forward_impl.1} parent=39 // pred_check
          %p239 = pneg %p34
        $region42: #{_mlp_forward_impl.1} parent=39 // pred_check_branch
          %241 = sbr.rel (%p239) target = $region44
        $region43: #{_mlp_forward_impl.1} parent=39 // pred_region
          %s242 = smul.u32 4, %s14
          %s243 = ssub.s32 7, %s242
          %p244 = scmp.lt.s32.totalorder %s243, 4
          %s245 = scalar_select %p244, %s243, 4
          %s246 = smul.u32 128, %s245
          %p247 = scmp.lt.s32.totalorder %s242, 6
          %s248 = scalar_select %p247, %s242, 6
          %s249 = smul.addr %s248, 8
          %s250 = scalar_lea.vmem %s0, %s249
          %s251 = smul.u32 4, %s14
          %s252 = ssub.s32 7, %s251
          %p253 = scmp.lt.s32.totalorder %s252, 4
          %s254 = scalar_select %p253, %s252, 4
          %s255 = smul.u32 128, %s254
        $region44: #{_mlp_forward_impl.1} parent=39 // pred_fallthru
          _
      $region40: #{_mlp_forward_impl.1} parent=5 // pred_fallthru
        _
      %p256 = scmp.le.s32.totalorder 1, %s14
      %p257 = scmp.lt.s32.totalorder %s14, 3
      %p258 = pnand %p256, %p257
      %p259 = pneg %p258
      // Predicated region
      $region45: #{_mlp_forward_impl.1} parent=5 // pred_check
        _
      $region46: #{_mlp_forward_impl.1} parent=5 // pred_check_branch
        %261 = sbr.rel (%p258) target = $region48
      $region47: #{_mlp_forward_impl.1} parent=5 // pred_region
        %s262 = ssub.s32 %s14, 1
        // Predicated region
        $region49: #{_mlp_forward_impl.1} parent=47 // pred_check
          %p263 = pneg %p145
        $region50: #{_mlp_forward_impl.1} parent=47 // pred_check_branch
          %265 = sbr.rel (%p263) target = $region52
        $region51: #{_mlp_forward_impl.1} parent=47 // pred_region
          %266 = dma.done [#allocation3], 1024
        $region52: #{_mlp_forward_impl.1} parent=47 // pred_fallthru
          _
        %s267 = smul.u32 4, %s19
        %s268 = ssub.s32 7, %s267
        %p269 = scmp.lt.s32.totalorder %s268, 4
        %s270 = scalar_select %p269, %s268, 4
        %s271 = smul.u32 128, %s270
        %p272 = scmp.lt.s32.totalorder %s267, 6
        %s273 = scalar_select %p272, %s267, 6
        %s274 = smul.addr %s273, 8
        %s275 = scalar_lea.vmem %s0, %s274
        %p276 = pneg %p40
        %p277 = pneg %p37
        %p278 = pneg %p61
        %p279 = pneg %p58
        %p280 = pneg %p82
        %p281 = pneg %p79
        %p282 = pneg %p103
        %p283 = pneg %p100
        %p284 = pneg %p124
        %p285 = pneg %p121
        %p286 = pneg %p145
        %p287 = pneg %p142
        %p288 = pneg %p166
        %p289 = pneg %p163
        %p290 = pneg %p192
        %p291 = pneg %p189
        %s292 = sand.u32 %s179, 1
        %s293 = sand.u32 %s179, 1
        %s294 = smul.addr %s293, 16
        %s295 = scalar_lea.vmem [#allocation4], %s294
        %s296 = smul.u32 4, %s19
        %s297 = ssub.s32 7, %s296
        %p298 = scmp.lt.s32.totalorder %s297, 4
        %s299 = scalar_select %p298, %s297, 4
        %s300 = smul.u32 128, %s299
        %p301 = scmp.lt.s32.totalorder %s296, 6
        %s302 = scalar_select %p301, %s296, 6
        %s303 = smul.addr %s302, 8
        %s304 = scalar_lea.vmem %s0, %s303
        %s305 = smul.u32 4, %s19
        %s306 = ssub.s32 7, %s305
        %p307 = scmp.lt.s32.totalorder %s306, 4
        %s308 = scalar_select %p307, %s306, 4
        %s309 = smul.u32 128, %s308
        %s310 = smul.u32 4, %s19
        %s311 = ssub.s32 7, %s310
        %p312 = scmp.lt.s32.totalorder %s311, 4
        %s313 = scalar_select %p312, %s311, 4
        %s314 = smul.u32 64, %s313
        %v316 = vld [vmem:[%s304] sm:$0xff]
        %v317 = vld [vmem:[%s304 + $0x8] sm:$0xff]
        %v318 = vld [vmem:[%s304 + $0x10] sm:$0xff]
        %v319 = vld [vmem:[%s304 + $0x18] sm:$0xff]
        %v320 = vpack.c.bf16 %v317, %v316
        %v321 = vpack.c.bf16 %v319, %v318
        %v322 = vld [vmem:[%s1] sm:$0xf]
        %v323 = vld [vmem:[%s1 + $0x4] sm:$0xf]
        %v324 = vld [vmem:[%s2] sm:$0x1]
        %v326 = vlaneseq
        %v327 = vshrl.u32 %v326, 7
        %v328 = vsub.s32 0, %v327
        %v329 = vrot.slane %v324, %v328
        %v333 = vunpack.c.l.b16 %v322
        %v334 = vunpack.c.l.b16 %v323
        %v335 = vpack.c.b16 %v334, %v333
        %vm337 = vcmask 130048
        %v339 = vsel %vm337, %v320, 0
        %v342 = vsel %vm337, %v321, 0
        %344 = vmatprep.subr.bf16.mxu0 0
        %345 = vmatpush1.bf16.msra.mxu0 %v335
        %346 = vmatprep.subr.bf16.mxu0 0
        %347 = vmatpush1.bf16.msra.mxu0 0
        %348 = vmatprep.subr.bf16.mxu0 0
        %349 = vmatpush1.bf16.msra.mxu0 0
        %350 = vmatprep.subr.bf16.mxu0 0
        %351 = vmatpush1.bf16.msra.mxu0 0
        %352 = vmatprep.subr.bf16.mxu0 0
        %353 = vmatpush1.bf16.msra.mxu0 0
        %354 = vmatprep.subr.bf16.mxu0 0
        %355 = vmatpush1.bf16.msra.mxu0 0
        %356 = vmatprep.subr.bf16.mxu0 0
        %357 = vmatpush1.bf16.msra.mxu0 0
        %358 = vmatprep.subr.bf16.mxu0 0
        %359 = vmatpush1.bf16.msra.mxu0 0
        %360 = vmatprep.subr.bf16.mxu0 0
        %361 = vmatpush1.bf16.msra.mxu0 0
        %362 = vmatprep.subr.bf16.mxu0 0
        %363 = vmatpush1.bf16.msra.mxu0 0
        %364 = vmatprep.subr.bf16.mxu0 0
        %365 = vmatpush1.bf16.msra.mxu0 0
        %366 = vmatprep.subr.bf16.mxu0 0
        %367 = vmatpush1.bf16.msra.mxu0 0
        %368 = vmatprep.subr.bf16.mxu0 0
        %369 = vmatpush1.bf16.msra.mxu0 0
        %370 = vmatprep.subr.bf16.mxu0 0
        %371 = vmatpush1.bf16.msra.mxu0 0
        %372 = vmatprep.subr.bf16.mxu0 0
        %373 = vmatpush1.bf16.msra.mxu0 0
        %374 = vmatprep.subr.bf16.mxu0 0
        %375 = vmatpush1.bf16.msra.mxu0 0
        %376 = vmatprep.mubr.bf16.mxu0 0
        %377 = vmatmul.mubr.bf16.gmra.mrb[0].mxu0 %v339
        %v378 = vpop.f32.mrb[0].mxu0
        %v379 = vadd.f32 %v329, %v378
        %v380 = vpop.f32.mrb[0].mxu0
        %v381 = vpop.f32.mrb[0].mxu0
        %v382 = vadd.f32 %v329, %v381
        %v383 = vpop.f32.mrb[0].mxu0
        %384 = vmatprep.mubr.bf16.mxu0 0
        %385 = vmatmul.mubr.bf16.gmra.mrb[0].mxu0 %v342
        %v386 = vpop.f32.mrb[0].mxu0
        %v387 = vadd.f32 %v329, %v386
        %v388 = vpop.f32.mrb[0].mxu0
        %v389 = vpop.f32.mrb[0].mxu0
        %v390 = vadd.f32 %v329, %v389
        %v391 = vpop.f32.mrb[0].mxu0
        %392 = vdwg.mxu0
        %v393 = vmax.f32 %v379, 0.0
        %v394 = vmax.f32 %v382, 0.0
        %v395 = vmax.f32 %v387, 0.0
        %v396 = vmax.f32 %v390, 0.0
        %v397 = vpack.c.bf16 %v394, %v393
        %v398 = vpack.c.bf16 %v396, %v395
        %v399 = vld [vmem:[%s3] sm:$0xf]
        %v400 = vld [vmem:[%s3 + $0x4] sm:$0xf]
        %v401 = vld [vmem:[%s3 + $0x8] sm:$0xf]
        %v402 = vld [vmem:[%s3 + $0xc] sm:$0xf]
        %v403 = vld [vmem:[%s3 + $0x10] sm:$0xf]
        %v404 = vld [vmem:[%s3 + $0x14] sm:$0xf]
        %v405 = vld [vmem:[%s3 + $0x18] sm:$0xf]
        %v406 = vld [vmem:[%s3 + $0x1c] sm:$0xf]
        %v407 = vld [vmem:[%s3 + $0x20] sm:$0xf]
        %v408 = vld [vmem:[%s3 + $0x24] sm:$0xf]
        %v409 = vld [vmem:[%s3 + $0x28] sm:$0xf]
        %v410 = vld [vmem:[%s3 + $0x2c] sm:$0xf]
        %v411 = vld [vmem:[%s3 + $0x30] sm:$0xf]
        %v412 = vld [vmem:[%s3 + $0x34] sm:$0xf]
        %v413 = vld [vmem:[%s3 + $0x38] sm:$0xf]
        %v414 = vld [vmem:[%s3 + $0x3c] sm:$0xf]
        %v415 = vld [vmem:[%s4] sm:$0x1]
        %v417 = vlaneseq
        %v418 = vshrl.u32 %v417, 7
        %v419 = vsub.s32 0, %v418
        %v420 = vrot.slane %v415, %v419
        %v438 = vunpack.c.l.b16 %v399
        %v439 = vunpack.c.l.b16 %v400
        %v440 = vunpack.c.l.b16 %v401
        %v441 = vunpack.c.l.b16 %v402
        %v442 = vunpack.c.l.b16 %v403
        %v443 = vunpack.c.l.b16 %v404
        %v444 = vunpack.c.l.b16 %v405
        %v445 = vunpack.c.l.b16 %v406
        %v446 = vunpack.c.l.b16 %v407
        %v447 = vunpack.c.l.b16 %v408
        %v448 = vunpack.c.l.b16 %v409
        %v449 = vunpack.c.l.b16 %v410
        %v450 = vunpack.c.l.b16 %v411
        %v451 = vunpack.c.l.b16 %v412
        %v452 = vunpack.c.l.b16 %v413
        %v453 = vunpack.c.l.b16 %v414
        %v454 = vpack.c.b16 %v439, %v438
        %v455 = vpack.c.b16 %v441, %v440
        %v456 = vpack.c.b16 %v443, %v442
        %v457 = vpack.c.b16 %v445, %v444
        %v458 = vpack.c.b16 %v447, %v446
        %v459 = vpack.c.b16 %v449, %v448
        %v460 = vpack.c.b16 %v451, %v450
        %v461 = vpack.c.b16 %v453, %v452
        %470 = vmatprep.subr.bf16.mxu0 0
        %471 = vmatpush1.bf16.msra.mxu0 %v454
        %472 = vmatprep.subr.bf16.mxu0 0
        %473 = vmatpush1.bf16.msra.mxu0 %v455
        %474 = vmatprep.subr.bf16.mxu0 0
        %475 = vmatpush1.bf16.msra.mxu0 %v456
        %476 = vmatprep.subr.bf16.mxu0 0
        %477 = vmatpush1.bf16.msra.mxu0 %v457
        %478 = vmatprep.subr.bf16.mxu0 0
        %479 = vmatpush1.bf16.msra.mxu0 %v458
        %480 = vmatprep.subr.bf16.mxu0 0
        %481 = vmatpush1.bf16.msra.mxu0 %v459
        %482 = vmatprep.subr.bf16.mxu0 0
        %483 = vmatpush1.bf16.msra.mxu0 %v460
        %484 = vmatprep.subr.bf16.mxu0 0
        %485 = vmatpush1.bf16.msra.mxu0 %v461
        %486 = vmatprep.subr.bf16.mxu0 0
        %487 = vmatpush1.bf16.msra.mxu0 0
        %488 = vmatprep.subr.bf16.mxu0 0
        %489 = vmatpush1.bf16.msra.mxu0 0
        %490 = vmatprep.subr.bf16.mxu0 0
        %491 = vmatpush1.bf16.msra.mxu0 0
        %492 = vmatprep.subr.bf16.mxu0 0
        %493 = vmatpush1.bf16.msra.mxu0 0
        %494 = vmatprep.subr.bf16.mxu0 0
        %495 = vmatpush1.bf16.msra.mxu0 0
        %496 = vmatprep.subr.bf16.mxu0 0
        %497 = vmatpush1.bf16.msra.mxu0 0
        %498 = vmatprep.subr.bf16.mxu0 0
        %499 = vmatpush1.bf16.msra.mxu0 0
        %500 = vmatprep.subr.bf16.mxu0 0
        %501 = vmatpush1.bf16.msra.mxu0 0
        %502 = vmatprep.mubr.bf16.mxu0 0
        %503 = vmatmul.mubr.bf16.gmra.mrb[0].mxu0 %v397
        %v504 = vpop.f32.mrb[0].mxu0
        %v505 = vadd.f32 %v420, %v504
        %v506 = vpop.f32.mrb[0].mxu0
        %v507 = vpop.f32.mrb[0].mxu0
        %v508 = vadd.f32 %v420, %v507
        %v509 = vpop.f32.mrb[0].mxu0
        %510 = vmatprep.mubr.bf16.mxu0 0
        %511 = vmatmul.mubr.bf16.gmra.mrb[0].mxu0 %v398
        %v512 = vpop.f32.mrb[0].mxu0
        %v513 = vadd.f32 %v420, %v512
        %v514 = vpop.f32.mrb[0].mxu0
        %v515 = vpop.f32.mrb[0].mxu0
        %v516 = vadd.f32 %v420, %v515
        %v517 = vpop.f32.mrb[0].mxu0
        %518 = vdwg.mxu0
        %v519 = vmax.f32 %v505, 0.0
        %v520 = vmax.f32 %v508, 0.0
        %v521 = vmax.f32 %v513, 0.0
        %v522 = vmax.f32 %v516, 0.0
        %v523 = vpack.c.bf16 %v520, %v519
        %v524 = vpack.c.bf16 %v522, %v521
        %v525 = vld [vmem:[#allocation2] sm:$0xf]
        %v526 = vld [vmem:[#allocation2 + $0x4] sm:$0xf]
        %v527 = vld [vmem:[#allocation2 + $0x8] sm:$0xf]
        %v528 = vld [vmem:[#allocation2 + $0xc] sm:$0xf]
        %v529 = vld [vmem:[#allocation2 + $0x10] sm:$0xf]
        %v530 = vld [vmem:[#allocation2 + $0x14] sm:$0xf]
        %v531 = vld [vmem:[#allocation2 + $0x18] sm:$0xf]
        %v532 = vld [vmem:[#allocation2 + $0x1c] sm:$0xf]
        %v533 = vld [vmem:[#allocation2 + $0x20] sm:$0xf]
        %v534 = vld [vmem:[#allocation2 + $0x24] sm:$0xf]
        %v535 = vld [vmem:[#allocation2 + $0x28] sm:$0xf]
        %v536 = vld [vmem:[#allocation2 + $0x2c] sm:$0xf]
        %v537 = vld [vmem:[#allocation2 + $0x30] sm:$0xf]
        %v538 = vld [vmem:[#allocation2 + $0x34] sm:$0xf]
        %v539 = vld [vmem:[#allocation2 + $0x38] sm:$0xf]
        %v540 = vld [vmem:[#allocation2 + $0x3c] sm:$0xf]
        %v541 = vld [vmem:[%s6] sm:$0x1]
        %v543 = vlaneseq
        %v544 = vshrl.u32 %v543, 7
        %v545 = vsub.s32 0, %v544
        %v546 = vrot.slane %v541, %v545
        %v564 = vunpack.c.l.b16 %v525
        %v565 = vunpack.c.l.b16 %v526
        %v566 = vunpack.c.l.b16 %v527
        %v567 = vunpack.c.l.b16 %v528
        %v568 = vunpack.c.l.b16 %v529
        %v569 = vunpack.c.l.b16 %v530
        %v570 = vunpack.c.l.b16 %v531
        %v571 = vunpack.c.l.b16 %v532
        %v572 = vunpack.c.l.b16 %v533
        %v573 = vunpack.c.l.b16 %v534
        %v574 = vunpack.c.l.b16 %v535
        %v575 = vunpack.c.l.b16 %v536
        %v576 = vunpack.c.l.b16 %v537
        %v577 = vunpack.c.l.b16 %v538
        %v578 = vunpack.c.l.b16 %v539
        %v579 = vunpack.c.l.b16 %v540
        %v580 = vpack.c.b16 %v565, %v564
        %v581 = vpack.c.b16 %v567, %v566
        %v582 = vpack.c.b16 %v569, %v568
        %v583 = vpack.c.b16 %v571, %v570
        %v584 = vpack.c.b16 %v573, %v572
        %v585 = vpack.c.b16 %v575, %v574
        %v586 = vpack.c.b16 %v577, %v576
        %v587 = vpack.c.b16 %v579, %v578
        %596 = vmatprep.subr.bf16.mxu0 0
        %597 = vmatpush1.bf16.msra.mxu0 %v580
        %598 = vmatprep.subr.bf16.mxu0 0
        %599 = vmatpush1.bf16.msra.mxu0 %v581
        %600 = vmatprep.subr.bf16.mxu0 0
        %601 = vmatpush1.bf16.msra.mxu0 %v582
        %602 = vmatprep.subr.bf16.mxu0 0
        %603 = vmatpush1.bf16.msra.mxu0 %v583
        %604 = vmatprep.subr.bf16.mxu0 0
        %605 = vmatpush1.bf16.msra.mxu0 %v584
        %606 = vmatprep.subr.bf16.mxu0 0
        %607 = vmatpush1.bf16.msra.mxu0 %v585
        %608 = vmatprep.subr.bf16.mxu0 0
        %609 = vmatpush1.bf16.msra.mxu0 %v586
        %610 = vmatprep.subr.bf16.mxu0 0
        %611 = vmatpush1.bf16.msra.mxu0 %v587
        %612 = vmatprep.subr.bf16.mxu0 0
        %613 = vmatpush1.bf16.msra.mxu0 0
        %614 = vmatprep.subr.bf16.mxu0 0
        %615 = vmatpush1.bf16.msra.mxu0 0
        %616 = vmatprep.subr.bf16.mxu0 0
        %617 = vmatpush1.bf16.msra.mxu0 0
        %618 = vmatprep.subr.bf16.mxu0 0
        %619 = vmatpush1.bf16.msra.mxu0 0
        %620 = vmatprep.subr.bf16.mxu0 0
        %621 = vmatpush1.bf16.msra.mxu0 0
        %622 = vmatprep.subr.bf16.mxu0 0
        %623 = vmatpush1.bf16.msra.mxu0 0
        %624 = vmatprep.subr.bf16.mxu0 0
        %625 = vmatpush1.bf16.msra.mxu0 0
        %626 = vmatprep.subr.bf16.mxu0 0
        %627 = vmatpush1.bf16.msra.mxu0 0
        %628 = vmatprep.mubr.bf16.mxu0 0
        %629 = vmatmul.mubr.bf16.gmra.mrb[0].mxu0 %v523
        %v630 = vpop.f32.mrb[0].mxu0
        %v631 = vadd.f32 %v546, %v630
        %v632 = vpop.f32.mrb[0].mxu0
        %v633 = vpop.f32.mrb[0].mxu0
        %v634 = vadd.f32 %v546, %v633
        %v635 = vpop.f32.mrb[0].mxu0
        %636 = vmatprep.mubr.bf16.mxu0 0
        %637 = vmatmul.mubr.bf16.gmra.mrb[0].mxu0 %v524
        %v638 = vpop.f32.mrb[0].mxu0
        %v639 = vadd.f32 %v546, %v638
        %v640 = vpop.f32.mrb[0].mxu0
        %v641 = vpop.f32.mrb[0].mxu0
        %v642 = vadd.f32 %v546, %v641
        %v643 = vpop.f32.mrb[0].mxu0
        %644 = vdwg.mxu0
        %v645 = vpack.c.bf16 %v634, %v631
        %v646 = vpack.c.bf16 %v642, %v639
        %v649 = vunpack.c.l.b16 %v645
        %v650 = vunpack.c.h.b16 %v645
        %v651 = vunpack.c.l.b16 %v646
        %v652 = vunpack.c.h.b16 %v646
        %v653 = vpack.c.b16 %v649, %v649
        %v654 = vpack.c.b16 %v650, %v650
        %v655 = vpack.c.b16 %v651, %v651
        %v656 = vpack.c.b16 %v652, %v652
        %661 = vst [vmem:[%s295] sm:$0xf] %v653
        %662 = vst [vmem:[%s295 + $0x4] sm:$0xf] %v654
        %663 = vst [vmem:[%s295 + $0x8] sm:$0xf] %v655
        %664 = vst [vmem:[%s295 + $0xc] sm:$0xf] %v656
        %s665 = sand.u32 %s179, 1
        %s666 = sand.u32 %s179, 1
        %s667 = smul.addr %s666, 16
        %s668 = scalar_lea.vmem [#allocation4], %s667
        // Predicated region
        $region53: #{_mlp_forward_impl.1} parent=47 // pred_check
          %p669 = pneg %p189
        $region54: #{_mlp_forward_impl.1} parent=47 // pred_check_branch
          %671 = sbr.rel (%p669) target = $region56
        $region55: #{_mlp_forward_impl.1} parent=47 // pred_region
          %s672 = smul.u32 4, %s19
          %s673 = ssub.s32 7, %s672
          %p674 = scmp.lt.s32.totalorder %s673, 4
          %s675 = scalar_select %p674, %s673, 4
          %s676 = smul.u32 64, %s675
          %p677 = scmp.ne.s32.totalorder 0, %s676
          %s678 = smul.addr %s672, 4
          %s679 = scalar_lea.vmem %s7, %s678
          // Predicated region
          $region57: #{_mlp_forward_impl.1} parent=55 // pred_check
            %p680 = pneg %p677
          $region58: #{_mlp_forward_impl.1} parent=55 // pred_check_branch
            %682 = sbr.rel (%p680) target = $region60
          $region59: #{_mlp_forward_impl.1} parent=55 // pred_region
            // Predicated region
            $region61: #{_mlp_forward_impl.1} parent=59 // pred_check
              _
            $region62: #{_mlp_forward_impl.1} parent=59 // pred_check_branch
              %684 = sbr.rel target = $region64
            $region63: #{_mlp_forward_impl.1} parent=59 // pred_region
              // Predicated region
              $region83: #{_mlp_forward_impl.1} parent=63 // pred_check
                _
              $region84: #{_mlp_forward_impl.1} parent=63 // pred_check_branch
                %739 = sbr.rel (0) target = $region86
              $region85: #{_mlp_forward_impl.1} parent=63 // pred_region
                %s741 = sshrl.u32 %s675, 2
                // While loop
                $region87: #{_mlp_forward_impl.1} parent=85 // loop_pre_header
                  _
                $region88: #{_mlp_forward_impl.1} parent=85 // loop_header
                  %s743 = sphi 0, %s745
                  %p744 = scmp.ge.s32.totalorder %s743, %s741
                  %s748 = sphi 0, %s761
                  %s749 = sphi %s668, %s764
                  %s750 = sphi %s679, %s765
                $region89: #{_mlp_forward_impl.1} parent=85 // loop_header_branch
                  %747 = sbr.rel (%p744) target = $region93
                $region90: #{_mlp_forward_impl.1} parent=85 // loop_body
                  %v751 = vld [vmem:[%s749] sm:$0xf]
                  %752 = vst [vmem:[%s750] sm:$0xf] %v751
                  %v753 = vld [vmem:[%s749 + $0x4] sm:$0xf]
                  %754 = vst [vmem:[%s750 + $0x4] sm:$0xf] %v753
                  %v755 = vld [vmem:[%s749 + $0x8] sm:$0xf]
                  %756 = vst [vmem:[%s750 + $0x8] sm:$0xf] %v755
                  %v757 = vld [vmem:[%s749 + $0xc] sm:$0xf]
                  %758 = vst [vmem:[%s750 + $0xc] sm:$0xf] %v757
                  %s759 = sadd.s32 1, %s748
                  %p760 = scmp.ge.s32.totalorder %s759, %s741
                  %s761 = scalar_select %p760, 0, %s759
                  %s762 = smul.u32 %s761, 16
                  %s763 = smul.u32 %s761, 16
                  %s764 = scalar_lea.vmem %s668, %s762 [#allocation4]
                  %s765 = scalar_lea.vmem %s679, %s763
                $region91: #{_mlp_forward_impl.1} parent=85 // loop_footer
                  %s745 = sadd.s32 %s743, 1
                $region92: #{_mlp_forward_impl.1} parent=85 // loop_footer_branch
                  %742 = sbr.rel target = $region88
                $region93: #{_mlp_forward_impl.1} parent=85 // loop_exit
                  _
                %s766 = sshrl.u32 %s675, 2
                %s767 = sand.u32 %s675, 3
                %s768 = smul.u32 %s766, 4
                %s769 = smul.u32 4, %s768
                %s770 = scalar_lea.vmem %s668, %s769 [#allocation4]
                %s771 = smul.u32 4, %s768
                %s772 = scalar_lea.vmem %s679, %s771
                // While loop
                $region94: #{_mlp_forward_impl.1} parent=85 // loop_pre_header
                  _
                $region95: #{_mlp_forward_impl.1} parent=85 // loop_header
                  %s774 = sphi 0, %s776
                  %p775 = scmp.ge.s32.totalorder %s774, %s767
                  %s779 = sphi 0, %s786
                  %s780 = sphi %s770, %s789
                  %s781 = sphi %s772, %s790
                $region96: #{_mlp_forward_impl.1} parent=85 // loop_header_branch
                  %778 = sbr.rel (%p775) target = $region100
                $region97: #{_mlp_forward_impl.1} parent=85 // loop_body
                  %v782 = vld [vmem:[%s780] sm:$0xf]
                  %783 = vst [vmem:[%s781] sm:$0xf] %v782
                  %s784 = sadd.s32 1, %s779
                  %p785 = scmp.ge.s32.totalorder %s784, %s767
                  %s786 = scalar_select %p785, 0, %s784
                  %s787 = smul.u32 %s786, 4
                  %s788 = smul.u32 %s786, 4
                  %s789 = scalar_lea.vmem %s770, %s787 [#allocation4]
                  %s790 = scalar_lea.vmem %s772, %s788
                $region98: #{_mlp_forward_impl.1} parent=85 // loop_footer
                  %s776 = sadd.s32 %s774, 1
                $region99: #{_mlp_forward_impl.1} parent=85 // loop_footer_branch
                  %773 = sbr.rel target = $region95
                $region100: #{_mlp_forward_impl.1} parent=85 // loop_exit
                  _
              $region86: #{_mlp_forward_impl.1} parent=63 // pred_fallthru
                _
            $region64: #{_mlp_forward_impl.1} parent=59 // pred_fallthru
              _
            // Predicated region
            $region65: #{_mlp_forward_impl.1} parent=59 // pred_check
              _
            $region66: #{_mlp_forward_impl.1} parent=59 // pred_check_branch
              %686 = sbr.rel (0) target = $region68
            $region67: #{_mlp_forward_impl.1} parent=59 // pred_region
              %s688 = sshrl.u32 %s675, 2
              // While loop
              $region69: #{_mlp_forward_impl.1} parent=67 // loop_pre_header
                _
              $region70: #{_mlp_forward_impl.1} parent=67 // loop_header
                %s690 = sphi 0, %s692
                %p691 = scmp.ge.s32.totalorder %s690, %s688
                %s695 = sphi 0, %s708
                %s696 = sphi %s668, %s711
                %s697 = sphi %s679, %s712
              $region71: #{_mlp_forward_impl.1} parent=67 // loop_header_branch
                %694 = sbr.rel (%p691) target = $region75
              $region72: #{_mlp_forward_impl.1} parent=67 // loop_body
                %v698 = vld [vmem:[%s696] sm:$0xf]
                %699 = vst [vmem:[%s697] sm:$0xf] %v698
                %v700 = vld [vmem:[%s696 + $0x4] sm:$0xf]
                %701 = vst [vmem:[%s697 + $0x4] sm:$0xf] %v700
                %v702 = vld [vmem:[%s696 + $0x8] sm:$0xf]
                %703 = vst [vmem:[%s697 + $0x8] sm:$0xf] %v702
                %v704 = vld [vmem:[%s696 + $0xc] sm:$0xf]
                %705 = vst [vmem:[%s697 + $0xc] sm:$0xf] %v704
                %s706 = sadd.s32 1, %s695
                %p707 = scmp.ge.s32.totalorder %s706, %s688
                %s708 = scalar_select %p707, 0, %s706
                %s709 = smul.u32 %s708, 16
                %s710 = smul.u32 %s708, 16
                %s711 = scalar_lea.vmem %s668, %s709 [#allocation4]
                %s712 = scalar_lea.vmem %s679, %s710
              $region73: #{_mlp_forward_impl.1} parent=67 // loop_footer
                %s692 = sadd.s32 %s690, 1
              $region74: #{_mlp_forward_impl.1} parent=67 // loop_footer_branch
                %689 = sbr.rel target = $region70
              $region75: #{_mlp_forward_impl.1} parent=67 // loop_exit
                _
              %s713 = sshrl.u32 %s675, 2
              %s714 = sand.u32 %s675, 3
              %s715 = smul.u32 %s713, 4
              %s716 = smul.u32 4, %s715
              %s717 = scalar_lea.vmem %s668, %s716 [#allocation4]
              %s718 = smul.u32 4, %s715
              %s719 = scalar_lea.vmem %s679, %s718
              // While loop
              $region76: #{_mlp_forward_impl.1} parent=67 // loop_pre_header
                _
              $region77: #{_mlp_forward_impl.1} parent=67 // loop_header
                %s721 = sphi 0, %s723
                %p722 = scmp.ge.s32.totalorder %s721, %s714
                %s726 = sphi 0, %s733
                %s727 = sphi %s717, %s736
                %s728 = sphi %s719, %s737
              $region78: #{_mlp_forward_impl.1} parent=67 // loop_header_branch
                %725 = sbr.rel (%p722) target = $region82
              $region79: #{_mlp_forward_impl.1} parent=67 // loop_body
                %v729 = vld [vmem:[%s727] sm:$0xf]
                %730 = vst [vmem:[%s728] sm:$0xf] %v729
                %s731 = sadd.s32 1, %s726
                %p732 = scmp.ge.s32.totalorder %s731, %s714
                %s733 = scalar_select %p732, 0, %s731
                %s734 = smul.u32 %s733, 4
                %s735 = smul.u32 %s733, 4
                %s736 = scalar_lea.vmem %s717, %s734 [#allocation4]
                %s737 = scalar_lea.vmem %s719, %s735
              $region80: #{_mlp_forward_impl.1} parent=67 // loop_footer
                %s723 = sadd.s32 %s721, 1
              $region81: #{_mlp_forward_impl.1} parent=67 // loop_footer_branch
                %720 = sbr.rel target = $region77
              $region82: #{_mlp_forward_impl.1} parent=67 // loop_exit
                _
            $region68: #{_mlp_forward_impl.1} parent=59 // pred_fallthru
              _
          $region60: #{_mlp_forward_impl.1} parent=55 // pred_fallthru
            _
          %791 = vnop
        $region56: #{_mlp_forward_impl.1} parent=47 // pred_fallthru
          _
      $region48: #{_mlp_forward_impl.1} parent=5 // pred_fallthru
        _
      %p792 = scmp.le.s32.totalorder 2, %s14
      // Predicated region
      $region101: #{_mlp_forward_impl.1} parent=5 // pred_check
        %p793 = pneg %p792
      $region102: #{_mlp_forward_impl.1} parent=5 // pred_check_branch
        %795 = sbr.rel (%p793) target = $region104
      $region103: #{_mlp_forward_impl.1} parent=5 // pred_region
        %s796 = ssub.s32 %s14, 2
        // Predicated region
        $region105: #{_mlp_forward_impl.1} parent=103 // pred_check
          %p797 = pneg %p195
        $region106: #{_mlp_forward_impl.1} parent=103 // pred_check_branch
          %799 = sbr.rel (%p797) target = $region108
        $region107: #{_mlp_forward_impl.1} parent=103 // pred_region
          %s800 = sand.u32 %s180, 1
          %s801 = sand.u32 %s180, 1
          %s802 = smul.addr %s801, 16
          %s803 = scalar_lea.vmem [#allocation4], %s802
        $region108: #{_mlp_forward_impl.1} parent=103 // pred_fallthru
          _
      $region104: #{_mlp_forward_impl.1} parent=5 // pred_fallthru
        _
    $region6: #{_mlp_forward_impl.1} parent=1 // loop_footer
      %s18 = sadd.s32 1, %s14
    $region7: #{_mlp_forward_impl.1} parent=1 // loop_footer_branch
      %13 = sbr.rel target = $region3
    $region8: #{_mlp_forward_impl.1} parent=1 // loop_exit
      _
    %804 = vsyncpa [#allocation3], 1
    %s805 = scalar_lea.sflag [#allocation3], 1
    %806 = vsyncpa %s805, 1

</llo_original>
